<compile_context>
chip_gen: v7x
topology: tpu7x:2x2x1
jax: 0.10.0
libtpu: 0.0.40
codegen_flags: <defaults>
</compile_context>

<pallas_src>
import jax
import jax.numpy as jnp
from jax.experimental import pallas as pl
from jax.experimental.pallas import tpu as pltpu

# Small shapes consistent with the module (seq, input, hidden, classes, layers=2)
B, T, D_IN, H, C = 2, 8, 16, 32, 10


def rnn_fc_kernel(x_ref,        # (T*B, D_IN)  time-major, flattened over (t, b)
                  wih0_ref,     # (D_IN, H)    = W_ih_l0.T
                  whh0_ref,     # (H, H)       = W_hh_l0.T
                  b0_ref,       # (1, H)       = b_ih_l0 + b_hh_l0
                  w1_ref,       # (2H, H)      = [W_ih_l1.T ; W_hh_l1.T]
                  b1_ref,       # (1, H)       = b_ih_l1 + b_hh_l1
                  wfc_ref,      # (T*H, C)     = fc.weight.T
                  bfc_ref,      # (1, C)
                  out_ref):     # (B, C)
    # Hoisted, time-independent input projection: one (T*B, D_IN)x(D_IN, H)
    # matmul + one bias broadcast instead of T per-step matmuls/broadcasts.
    pre0 = jnp.dot(x_ref[...], wih0_ref[...],
                   preferred_element_type=jnp.float32) + b0_ref[...]   # (T*B, H)

    # Invariant weights/biases: load once, close over them in the loop body.
    whh0 = whh0_ref[...]
    w1 = w1_ref[...]
    b1 = b1_ref[...]

    # Recurrent state lives in vregs; T is static so the loop is fully unrolled.
    h0 = jnp.zeros((B, H), jnp.float32)
    h1 = jnp.zeros((B, H), jnp.float32)
    h1_steps = []
    for t in range(T):
        pre0_t = pre0[t * B:(t + 1) * B, :]                            # (B, H)
        # layer 0: h0 = tanh(x_t @ Wih0^T + b0 + h0 @ Whh0^T)  (b0 pre-added)
        h0 = jnp.tanh(
            pre0_t + jnp.dot(h0, whh0, preferred_element_type=jnp.float32))
        # layer 1 fused: tanh([h0, h1_prev] @ [Wih1^T ; Whh1^T] + b1)
        h1 = jnp.tanh(
            jnp.dot(jnp.concatenate([h0, h1], axis=-1), w1,
                    preferred_element_type=jnp.float32) + b1)
        h1_steps.append(h1)

    # Deferred FC over the flattened sequence: lane-concat of the per-step h1
    # reproduces torch's out.reshape(B, T*H) layout, then one K = T*H matmul.
    h_all = jnp.concatenate(h1_steps, axis=-1)                         # (B, T*H)
    out_ref[...] = (jnp.dot(h_all, wfc_ref[...],
                            preferred_element_type=jnp.float32)
                    + bfc_ref[...])


def rnn_forward(x, params):
    """x: (B, T, D_IN) float32 -> (B, C) float32."""
    wih0, whh0, bih0, bhh0, wih1, whh1, bih1, bhh1, wfc, bfc = params
    # Time-major then flatten (t, b) so the hoisted input projection is one matmul.
    x_flat = jnp.transpose(x, (1, 0, 2)).reshape(T * B, D_IN)          # (T*B, D_IN)
    b0 = (bih0 + bhh0).reshape(1, H)
    b1 = (bih1 + bhh1).reshape(1, H)
    w1_stack = jnp.concatenate([wih1.T, whh1.T], axis=0)               # (2H, H)
    wfc_t = wfc.T                                                      # (T*H, C)
    bfc_r = bfc.reshape(1, C)

    vmem = pl.BlockSpec(memory_space=pltpu.MemorySpace.VMEM)
    return pl.pallas_call(
        rnn_fc_kernel,
        out_shape=jax.ShapeDtypeStruct((B, C), jnp.float32),
        in_specs=[vmem] * 8,
        out_specs=vmem,
    )(x_flat, wih0.T, whh0.T, b0, w1_stack, b1, wfc_t, bfc_r)


def rnn_reference(x, params):
    """Pure-JAX reference with PyTorch nn.RNN + Linear semantics."""
    wih0, whh0, bih0, bhh0, wih1, whh1, bih1, bhh1, wfc, bfc = params
    b = x.shape[0]
    h0 = jnp.zeros((b, H), jnp.float32)
    h1 = jnp.zeros((b, H), jnp.float32)
    outs = []
    for t in range(T):
        x_t = x[:, t, :]
        h0 = jnp.tanh(x_t @ wih0.T + bih0 + h0 @ whh0.T + bhh0)
        h1 = jnp.tanh(h0 @ wih1.T + bih1 + h1 @ whh1.T + bhh1)
        outs.append(h1)
    out = jnp.stack(outs, axis=1).reshape(b, -1)                       # (B, T*H)
    return out @ wfc.T + bfc


def init_params(key):
    """Deterministic init matching PyTorch parameter shapes (uniform +-1/sqrt(H))."""
    bound = 1.0 / jnp.sqrt(jnp.float32(H))
    ks = jax.random.split(key, 10)
    u = lambda k, shape: jax.random.uniform(k, shape, jnp.float32, -bound, bound)
    wih0 = u(ks[0], (H, D_IN))     # rnn.weight_ih_l0
    whh0 = u(ks[1], (H, H))        # rnn.weight_hh_l0
    bih0 = u(ks[2], (H,))          # rnn.bias_ih_l0
    bhh0 = u(ks[3], (H,))          # rnn.bias_hh_l0
    wih1 = u(ks[4], (H, H))        # rnn.weight_ih_l1
    whh1 = u(ks[5], (H, H))        # rnn.weight_hh_l1
    bih1 = u(ks[6], (H,))          # rnn.bias_ih_l1
    bhh1 = u(ks[7], (H,))          # rnn.bias_hh_l1
    wfc  = u(ks[8], (C, T * H))    # fc.weight
    bfc  = u(ks[9], (C,))          # fc.bias
    return (wih0, whh0, bih0, bhh0, wih1, whh1, bih1, bhh1, wfc, bfc)


if __name__ == "__main__":
    key = jax.random.PRNGKey(0)
    k_x, k_p = jax.random.split(key)
    x = jax.random.normal(k_x, (B, T, D_IN), jnp.float32)
    params = init_params(k_p)

    out = jax.block_until_ready(rnn_forward(x, params))
    ref = rnn_reference(x, params)

    assert out.shape == (B, C)
    assert jnp.allclose(out, ref, atol=1e-4, rtol=1e-4)
    print("KERNEL_OK")
</pallas_src>

<mosaic_0001>
module attributes {stable_mosaic.version = 11 : i64} {
  func.func @rnn_fc_kernel(%arg0: memref<16x16xf32, #tpu.memory_space<vmem>>, %arg1: memref<16x32xf32, #tpu.memory_space<vmem>>, %arg2: memref<32x32xf32, #tpu.memory_space<vmem>>, %arg3: memref<1x32xf32, #tpu.memory_space<vmem>>, %arg4: memref<64x32xf32, #tpu.memory_space<vmem>>, %arg5: memref<1x32xf32, #tpu.memory_space<vmem>>, %arg6: memref<256x10xf32, #tpu.memory_space<vmem>>, %arg7: memref<1x10xf32, #tpu.memory_space<vmem>>, %arg8: memref<2x10xf32, #tpu.memory_space<vmem>>) attributes {dimension_semantics = [], scalar_prefetch = 0 : i64, scratch_operands = 0 : i64, tpu.core_type = #tpu.core_type<tc>} {
    %c0 = arith.constant 0 : index
    %c0_0 = arith.constant 0 : index
    %0 = vector.load %arg0[%c0, %c0_0] : memref<16x16xf32, #tpu.memory_space<vmem>>, vector<16x16xf32>
    %c0_1 = arith.constant 0 : index
    %c0_2 = arith.constant 0 : index
    %1 = vector.load %arg1[%c0_1, %c0_2] : memref<16x32xf32, #tpu.memory_space<vmem>>, vector<16x32xf32>
    %cst = arith.constant dense<0.000000e+00> : vector<16x32xf32>
    %2 = tpu.matmul %0, %1, %cst {dimension_numbers = #tpu.dot_dimension_numbers<[1], [0], [0], [1], [0, 0, 1, 1], [], []>} : vector<16x16xf32>, vector<16x32xf32>, vector<16x32xf32> -> vector<16x32xf32>
    %c0_3 = arith.constant 0 : index
    %c0_4 = arith.constant 0 : index
    %3 = vector.load %arg3[%c0_3, %c0_4] : memref<1x32xf32, #tpu.memory_space<vmem>>, vector<1x32xf32>
    %4 = vector.broadcast %3 : vector<1x32xf32> to vector<16x32xf32>
    %5 = arith.addf %2, %4 : vector<16x32xf32>
    %c0_5 = arith.constant 0 : index
    %c0_6 = arith.constant 0 : index
    %6 = vector.load %arg2[%c0_5, %c0_6] : memref<32x32xf32, #tpu.memory_space<vmem>>, vector<32x32xf32>
    %c0_7 = arith.constant 0 : index
    %c0_8 = arith.constant 0 : index
    %7 = vector.load %arg4[%c0_7, %c0_8] : memref<64x32xf32, #tpu.memory_space<vmem>>, vector<64x32xf32>
    %c0_9 = arith.constant 0 : index
    %c0_10 = arith.constant 0 : index
    %8 = vector.load %arg5[%c0_9, %c0_10] : memref<1x32xf32, #tpu.memory_space<vmem>>, vector<1x32xf32>
    %cst_11 = arith.constant 0.000000e+00 : f32
    %9 = vector.broadcast %cst_11 : f32 to vector<2x32xf32>
    %cst_12 = arith.constant 0.000000e+00 : f32
    %10 = vector.broadcast %cst_12 : f32 to vector<2x32xf32>
    %11 = vector.extract_strided_slice %5 {offsets = [0, 0], sizes = [2, 32], strides = [1, 1]} : vector<16x32xf32> to vector<2x32xf32>
    %cst_13 = arith.constant dense<0.000000e+00> : vector<2x32xf32>
    %12 = tpu.matmul %9, %6, %cst_13 {dimension_numbers = #tpu.dot_dimension_numbers<[1], [0], [0], [1], [0, 0, 1, 1], [], []>} : vector<2x32xf32>, vector<32x32xf32>, vector<2x32xf32> -> vector<2x32xf32>
    %13 = arith.addf %11, %12 : vector<2x32xf32>
    %14 = math.tanh %13 : vector<2x32xf32>
    %15 = tpu.concatenate %14, %10 in 1 : vector<2x32xf32>, vector<2x32xf32> -> vector<2x64xf32>
    %cst_14 = arith.constant dense<0.000000e+00> : vector<2x32xf32>
    %16 = tpu.matmul %15, %7, %cst_14 {dimension_numbers = #tpu.dot_dimension_numbers<[1], [0], [0], [1], [0, 0, 1, 1], [], []>} : vector<2x64xf32>, vector<64x32xf32>, vector<2x32xf32> -> vector<2x32xf32>
    %17 = vector.broadcast %8 : vector<1x32xf32> to vector<2x32xf32>
    %18 = arith.addf %16, %17 : vector<2x32xf32>
    %19 = math.tanh %18 : vector<2x32xf32>
    %20 = vector.extract_strided_slice %5 {offsets = [2, 0], sizes = [2, 32], strides = [1, 1]} : vector<16x32xf32> to vector<2x32xf32>
    %cst_15 = arith.constant dense<0.000000e+00> : vector<2x32xf32>
    %21 = tpu.matmul %14, %6, %cst_15 {dimension_numbers = #tpu.dot_dimension_numbers<[1], [0], [0], [1], [0, 0, 1, 1], [], []>} : vector<2x32xf32>, vector<32x32xf32>, vector<2x32xf32> -> vector<2x32xf32>
    %22 = arith.addf %20, %21 : vector<2x32xf32>
    %23 = math.tanh %22 : vector<2x32xf32>
    %24 = tpu.concatenate %23, %19 in 1 : vector<2x32xf32>, vector<2x32xf32> -> vector<2x64xf32>
    %cst_16 = arith.constant dense<0.000000e+00> : vector<2x32xf32>
    %25 = tpu.matmul %24, %7, %cst_16 {dimension_numbers = #tpu.dot_dimension_numbers<[1], [0], [0], [1], [0, 0, 1, 1], [], []>} : vector<2x64xf32>, vector<64x32xf32>, vector<2x32xf32> -> vector<2x32xf32>
    %26 = vector.broadcast %8 : vector<1x32xf32> to vector<2x32xf32>
    %27 = arith.addf %25, %26 : vector<2x32xf32>
    %28 = math.tanh %27 : vector<2x32xf32>
    %29 = vector.extract_strided_slice %5 {offsets = [4, 0], sizes = [2, 32], strides = [1, 1]} : vector<16x32xf32> to vector<2x32xf32>
    %cst_17 = arith.constant dense<0.000000e+00> : vector<2x32xf32>
    %30 = tpu.matmul %23, %6, %cst_17 {dimension_numbers = #tpu.dot_dimension_numbers<[1], [0], [0], [1], [0, 0, 1, 1], [], []>} : vector<2x32xf32>, vector<32x32xf32>, vector<2x32xf32> -> vector<2x32xf32>
    %31 = arith.addf %29, %30 : vector<2x32xf32>
    %32 = math.tanh %31 : vector<2x32xf32>
    %33 = tpu.concatenate %32, %28 in 1 : vector<2x32xf32>, vector<2x32xf32> -> vector<2x64xf32>
    %cst_18 = arith.constant dense<0.000000e+00> : vector<2x32xf32>
    %34 = tpu.matmul %33, %7, %cst_18 {dimension_numbers = #tpu.dot_dimension_numbers<[1], [0], [0], [1], [0, 0, 1, 1], [], []>} : vector<2x64xf32>, vector<64x32xf32>, vector<2x32xf32> -> vector<2x32xf32>
    %35 = vector.broadcast %8 : vector<1x32xf32> to vector<2x32xf32>
    %36 = arith.addf %34, %35 : vector<2x32xf32>
    %37 = math.tanh %36 : vector<2x32xf32>
    %38 = vector.extract_strided_slice %5 {offsets = [6, 0], sizes = [2, 32], strides = [1, 1]} : vector<16x32xf32> to vector<2x32xf32>
    %cst_19 = arith.constant dense<0.000000e+00> : vector<2x32xf32>
    %39 = tpu.matmul %32, %6, %cst_19 {dimension_numbers = #tpu.dot_dimension_numbers<[1], [0], [0], [1], [0, 0, 1, 1], [], []>} : vector<2x32xf32>, vector<32x32xf32>, vector<2x32xf32> -> vector<2x32xf32>
    %40 = arith.addf %38, %39 : vector<2x32xf32>
    %41 = math.tanh %40 : vector<2x32xf32>
    %42 = tpu.concatenate %41, %37 in 1 : vector<2x32xf32>, vector<2x32xf32> -> vector<2x64xf32>
    %cst_20 = arith.constant dense<0.000000e+00> : vector<2x32xf32>
    %43 = tpu.matmul %42, %7, %cst_20 {dimension_numbers = #tpu.dot_dimension_numbers<[1], [0], [0], [1], [0, 0, 1, 1], [], []>} : vector<2x64xf32>, vector<64x32xf32>, vector<2x32xf32> -> vector<2x32xf32>
    %44 = vector.broadcast %8 : vector<1x32xf32> to vector<2x32xf32>
    %45 = arith.addf %43, %44 : vector<2x32xf32>
    %46 = math.tanh %45 : vector<2x32xf32>
    %47 = vector.extract_strided_slice %5 {offsets = [8, 0], sizes = [2, 32], strides = [1, 1]} : vector<16x32xf32> to vector<2x32xf32>
    %cst_21 = arith.constant dense<0.000000e+00> : vector<2x32xf32>
    %48 = tpu.matmul %41, %6, %cst_21 {dimension_numbers = #tpu.dot_dimension_numbers<[1], [0], [0], [1], [0, 0, 1, 1], [], []>} : vector<2x32xf32>, vector<32x32xf32>, vector<2x32xf32> -> vector<2x32xf32>
    %49 = arith.addf %47, %48 : vector<2x32xf32>
    %50 = math.tanh %49 : vector<2x32xf32>
    %51 = tpu.concatenate %50, %46 in 1 : vector<2x32xf32>, vector<2x32xf32> -> vector<2x64xf32>
    %cst_22 = arith.constant dense<0.000000e+00> : vector<2x32xf32>
    %52 = tpu.matmul %51, %7, %cst_22 {dimension_numbers = #tpu.dot_dimension_numbers<[1], [0], [0], [1], [0, 0, 1, 1], [], []>} : vector<2x64xf32>, vector<64x32xf32>, vector<2x32xf32> -> vector<2x32xf32>
    %53 = vector.broadcast %8 : vector<1x32xf32> to vector<2x32xf32>
    %54 = arith.addf %52, %53 : vector<2x32xf32>
    %55 = math.tanh %54 : vector<2x32xf32>
    %56 = vector.extract_strided_slice %5 {offsets = [10, 0], sizes = [2, 32], strides = [1, 1]} : vector<16x32xf32> to vector<2x32xf32>
    %cst_23 = arith.constant dense<0.000000e+00> : vector<2x32xf32>
    %57 = tpu.matmul %50, %6, %cst_23 {dimension_numbers = #tpu.dot_dimension_numbers<[1], [0], [0], [1], [0, 0, 1, 1], [], []>} : vector<2x32xf32>, vector<32x32xf32>, vector<2x32xf32> -> vector<2x32xf32>
    %58 = arith.addf %56, %57 : vector<2x32xf32>
    %59 = math.tanh %58 : vector<2x32xf32>
    %60 = tpu.concatenate %59, %55 in 1 : vector<2x32xf32>, vector<2x32xf32> -> vector<2x64xf32>
    %cst_24 = arith.constant dense<0.000000e+00> : vector<2x32xf32>
    %61 = tpu.matmul %60, %7, %cst_24 {dimension_numbers = #tpu.dot_dimension_numbers<[1], [0], [0], [1], [0, 0, 1, 1], [], []>} : vector<2x64xf32>, vector<64x32xf32>, vector<2x32xf32> -> vector<2x32xf32>
    %62 = vector.broadcast %8 : vector<1x32xf32> to vector<2x32xf32>
    %63 = arith.addf %61, %62 : vector<2x32xf32>
    %64 = math.tanh %63 : vector<2x32xf32>
    %65 = vector.extract_strided_slice %5 {offsets = [12, 0], sizes = [2, 32], strides = [1, 1]} : vector<16x32xf32> to vector<2x32xf32>
    %cst_25 = arith.constant dense<0.000000e+00> : vector<2x32xf32>
    %66 = tpu.matmul %59, %6, %cst_25 {dimension_numbers = #tpu.dot_dimension_numbers<[1], [0], [0], [1], [0, 0, 1, 1], [], []>} : vector<2x32xf32>, vector<32x32xf32>, vector<2x32xf32> -> vector<2x32xf32>
    %67 = arith.addf %65, %66 : vector<2x32xf32>
    %68 = math.tanh %67 : vector<2x32xf32>
    %69 = tpu.concatenate %68, %64 in 1 : vector<2x32xf32>, vector<2x32xf32> -> vector<2x64xf32>
    %cst_26 = arith.constant dense<0.000000e+00> : vector<2x32xf32>
    %70 = tpu.matmul %69, %7, %cst_26 {dimension_numbers = #tpu.dot_dimension_numbers<[1], [0], [0], [1], [0, 0, 1, 1], [], []>} : vector<2x64xf32>, vector<64x32xf32>, vector<2x32xf32> -> vector<2x32xf32>
    %71 = vector.broadcast %8 : vector<1x32xf32> to vector<2x32xf32>
    %72 = arith.addf %70, %71 : vector<2x32xf32>
    %73 = math.tanh %72 : vector<2x32xf32>
    %74 = vector.extract_strided_slice %5 {offsets = [14, 0], sizes = [2, 32], strides = [1, 1]} : vector<16x32xf32> to vector<2x32xf32>
    %cst_27 = arith.constant dense<0.000000e+00> : vector<2x32xf32>
    %75 = tpu.matmul %68, %6, %cst_27 {dimension_numbers = #tpu.dot_dimension_numbers<[1], [0], [0], [1], [0, 0, 1, 1], [], []>} : vector<2x32xf32>, vector<32x32xf32>, vector<2x32xf32> -> vector<2x32xf32>
    %76 = arith.addf %74, %75 : vector<2x32xf32>
    %77 = math.tanh %76 : vector<2x32xf32>
    %78 = tpu.concatenate %77, %73 in 1 : vector<2x32xf32>, vector<2x32xf32> -> vector<2x64xf32>
    %cst_28 = arith.constant dense<0.000000e+00> : vector<2x32xf32>
    %79 = tpu.matmul %78, %7, %cst_28 {dimension_numbers = #tpu.dot_dimension_numbers<[1], [0], [0], [1], [0, 0, 1, 1], [], []>} : vector<2x64xf32>, vector<64x32xf32>, vector<2x32xf32> -> vector<2x32xf32>
    %80 = vector.broadcast %8 : vector<1x32xf32> to vector<2x32xf32>
    %81 = arith.addf %79, %80 : vector<2x32xf32>
    %82 = math.tanh %81 : vector<2x32xf32>
    %83 = tpu.concatenate %19, %28, %37, %46, %55, %64, %73, %82 in 1 : vector<2x32xf32>, vector<2x32xf32>, vector<2x32xf32>, vector<2x32xf32>, vector<2x32xf32>, vector<2x32xf32>, vector<2x32xf32>, vector<2x32xf32> -> vector<2x256xf32>
    %c0_29 = arith.constant 0 : index
    %c0_30 = arith.constant 0 : index
    %84 = vector.load %arg6[%c0_29, %c0_30] : memref<256x10xf32, #tpu.memory_space<vmem>>, vector<256x10xf32>
    %cst_31 = arith.constant dense<0.000000e+00> : vector<2x10xf32>
    %85 = tpu.matmul %83, %84, %cst_31 {dimension_numbers = #tpu.dot_dimension_numbers<[1], [0], [0], [1], [0, 0, 1, 1], [], []>} : vector<2x256xf32>, vector<256x10xf32>, vector<2x10xf32> -> vector<2x10xf32>
    %c0_32 = arith.constant 0 : index
    %c0_33 = arith.constant 0 : index
    %86 = vector.load %arg7[%c0_32, %c0_33] : memref<1x10xf32, #tpu.memory_space<vmem>>, vector<1x10xf32>
    %87 = vector.broadcast %86 : vector<1x10xf32> to vector<2x10xf32>
    %88 = arith.addf %85, %87 : vector<2x10xf32>
    %c0_34 = arith.constant 0 : index
    %c0_35 = arith.constant 0 : index
    %89 = vector.load %arg8[%c0_34, %c0_35] : memref<2x10xf32, #tpu.memory_space<vmem>>, vector<2x10xf32>
    tpu.vector_store %arg8[%c0_34, %c0_35], %88 {strides = array<i32>} : memref<2x10xf32, #tpu.memory_space<vmem>>, vector<2x10xf32>,
    return
  }
}

</mosaic_0001>

<llo_original>
// kernel: tpu_custom_call.1
$region0: #{tpu_custom_call.1}
  #allocation0 [shape = 'u32[]', space=smem, size = 0x4, offset = 0x4, fixed_abs, tag = 'smem constant byte address 0x4 - core index']
  #allocation1 [shape = 'u32[144,128]{1,0:T(1,128)}', space=vmem, size = 0x12000, scoped, tag = 'internal scratch']
  %s0 = inlined_call_operand.vmem [shape: f32[16,16], index: 0, kind: input, shape index: {}]
  %s1 = inlined_call_operand.vmem [shape: f32[16,32], index: 1, kind: input, shape index: {}]
  %s2 = inlined_call_operand.vmem [shape: f32[32,32], index: 2, kind: input, shape index: {}]
  %s3 = inlined_call_operand.vmem [shape: f32[1,32], index: 3, kind: input, shape index: {}]
  %s4 = inlined_call_operand.vmem [shape: f32[64,32], index: 4, kind: input, shape index: {}]
  %s5 = inlined_call_operand.vmem [shape: f32[1,32], index: 5, kind: input, shape index: {}]
  %s6 = inlined_call_operand.vmem [shape: f32[256,10], index: 6, kind: input, shape index: {}]
  %s7 = inlined_call_operand.vmem [shape: f32[1,10], index: 7, kind: input, shape index: {}]
  %s8 = inlined_call_operand.hbm [shape: f32[2,10], index: 8, kind: output, shape index: {}]
  %s9 = sld [smem:[#allocation0]]
  $region42: #{tpu_custom_call.1} parent=0
    _
  %s11 = ssub.s32 1, %s9
  %s12 = scalar_select 0, %s11, %s9
  $region1: #{tpu_custom_call.1} parent=0
    #allocation2 [shape = 'u8[1024]{0}', space=vmem, size = 0x400, scoped, tag = 'output window, operand 0, single buffered']
    #allocation3 [shape = 's32[1]{0}', space=sflag, size = 0x4, scoped, tag = 'scoped memory for tpu_custom_call.1']
    %13 = vsyncpa [#allocation3], 0
    // Predicated region
    $region2: #{tpu_custom_call.1} parent=1 // pred_check
      _
    $region3: #{tpu_custom_call.1} parent=1 // pred_check_branch
      %15 = sbr.rel (0) target = $region5
    $region4: #{tpu_custom_call.1} parent=1 // pred_region
      _
    $region5: #{tpu_custom_call.1} parent=1 // pred_fallthru
      _
    // Predicated region
    $region6: #{tpu_custom_call.1} parent=1 // pred_check
      _
    $region7: #{tpu_custom_call.1} parent=1 // pred_check_branch
      %17 = sbr.rel (0) target = $region9
    $region8: #{tpu_custom_call.1} parent=1 // pred_region
      _
    $region9: #{tpu_custom_call.1} parent=1 // pred_fallthru
      _
    // Predicated region
    $region10: #{tpu_custom_call.1} parent=1 // pred_check
      _
    $region11: #{tpu_custom_call.1} parent=1 // pred_check_branch
      %19 = sbr.rel (0) target = $region13
    $region12: #{tpu_custom_call.1} parent=1 // pred_region
      _
    $region13: #{tpu_custom_call.1} parent=1 // pred_fallthru
      _
    // Predicated region
    $region14: #{tpu_custom_call.1} parent=1 // pred_check
      _
    $region15: #{tpu_custom_call.1} parent=1 // pred_check_branch
      %21 = sbr.rel (0) target = $region17
    $region16: #{tpu_custom_call.1} parent=1 // pred_region
      _
    $region17: #{tpu_custom_call.1} parent=1 // pred_fallthru
      _
    // Predicated region
    $region18: #{tpu_custom_call.1} parent=1 // pred_check
      _
    $region19: #{tpu_custom_call.1} parent=1 // pred_check_branch
      %23 = sbr.rel (0) target = $region21
    $region20: #{tpu_custom_call.1} parent=1 // pred_region
      _
    $region21: #{tpu_custom_call.1} parent=1 // pred_fallthru
      _
    // Predicated region
    $region22: #{tpu_custom_call.1} parent=1 // pred_check
      _
    $region23: #{tpu_custom_call.1} parent=1 // pred_check_branch
      %25 = sbr.rel (0) target = $region25
    $region24: #{tpu_custom_call.1} parent=1 // pred_region
      _
    $region25: #{tpu_custom_call.1} parent=1 // pred_fallthru
      _
    // Predicated region
    $region26: #{tpu_custom_call.1} parent=1 // pred_check
      _
    $region27: #{tpu_custom_call.1} parent=1 // pred_check_branch
      %27 = sbr.rel (0) target = $region29
    $region28: #{tpu_custom_call.1} parent=1 // pred_region
      _
    $region29: #{tpu_custom_call.1} parent=1 // pred_fallthru
      _
    // Predicated region
    $region30: #{tpu_custom_call.1} parent=1 // pred_check
      _
    $region31: #{tpu_custom_call.1} parent=1 // pred_check_branch
      %29 = sbr.rel (0) target = $region33
    $region32: #{tpu_custom_call.1} parent=1 // pred_region
      _
    $region33: #{tpu_custom_call.1} parent=1 // pred_fallthru
      _
    %v30 = vld [vmem:[%s0] sm:$0xff]
    %v31 = vld [vmem:[%s0 + $0x8] sm:$0xff]
    %v32 = vld [vmem:[%s1] sm:$0xff]
    %v33 = vld [vmem:[%s1 + $0x8] sm:$0xff]
    %v34 = vld [vmem:[%s3] sm:$0x1]
    %v36 = vlaneseq
    %v37 = vshrl.u32 %v36, 7
    %v38 = vsub.s32 0, %v37
    %v39 = vrot.slane %v34, %v38
    %vm41 = vcmask 130048
    %v43 = vsel %vm41, %v30, 0
    %v46 = vsel %vm41, %v31, 0
    %48 = vmatprep.subr.mxu0 0.0
    %49 = vmatpush1.msra.mxu0 %v32
    %50 = vmatprep.subr.mxu0 0.0
    %51 = vmatpush1.msra.mxu0 %v33
    %52 = vmatprep.subr.mxu0 0.0
    %53 = vmatpush1.msra.mxu0 0.0
    %54 = vmatprep.subr.mxu0 0.0
    %55 = vmatpush1.msra.mxu0 0.0
    %56 = vmatprep.subr.mxu0 0.0
    %57 = vmatpush1.msra.mxu0 0.0
    %58 = vmatprep.subr.mxu0 0.0
    %59 = vmatpush1.msra.mxu0 0.0
    %60 = vmatprep.subr.mxu0 0.0
    %61 = vmatpush1.msra.mxu0 0.0
    %62 = vmatprep.subr.mxu0 0.0
    %63 = vmatpush1.msra.mxu0 0.0
    %64 = vmatprep.subr.mxu0 0.0
    %65 = vmatpush1.msra.mxu0 0.0
    %66 = vmatprep.subr.mxu0 0.0
    %67 = vmatpush1.msra.mxu0 0.0
    %68 = vmatprep.subr.mxu0 0.0
    %69 = vmatpush1.msra.mxu0 0.0
    %70 = vmatprep.subr.mxu0 0.0
    %71 = vmatpush1.msra.mxu0 0.0
    %72 = vmatprep.subr.mxu0 0.0
    %73 = vmatpush1.msra.mxu0 0.0
    %74 = vmatprep.subr.mxu0 0.0
    %75 = vmatpush1.msra.mxu0 0.0
    %76 = vmatprep.subr.mxu0 0.0
    %77 = vmatpush1.msra.mxu0 0.0
    %78 = vmatprep.subr.mxu0 0.0
    %79 = vmatpush1.msra.mxu0 0.0
    %80 = vmatprep.subr.mxu0 0.0
    %81 = vmatpush1.msra.mxu0 0.0
    %82 = vmatprep.subr.mxu0 0.0
    %83 = vmatpush1.msra.mxu0 0.0
    %84 = vmatprep.subr.mxu0 0.0
    %85 = vmatpush1.msra.mxu0 0.0
    %86 = vmatprep.subr.mxu0 0.0
    %87 = vmatpush1.msra.mxu0 0.0
    %88 = vmatprep.subr.mxu0 0.0
    %89 = vmatpush1.msra.mxu0 0.0
    %90 = vmatprep.subr.mxu0 0.0
    %91 = vmatpush1.msra.mxu0 0.0
    %92 = vmatprep.subr.mxu0 0.0
    %93 = vmatpush1.msra.mxu0 0.0
    %94 = vmatprep.subr.mxu0 0.0
    %95 = vmatpush1.msra.mxu0 0.0
    %96 = vmatprep.subr.mxu0 0.0
    %97 = vmatpush1.msra.mxu0 0.0
    %98 = vmatprep.subr.mxu0 0.0
    %99 = vmatpush1.msra.mxu0 0.0
    %100 = vmatprep.subr.mxu0 0.0
    %101 = vmatpush1.msra.mxu0 0.0
    %102 = vmatprep.subr.mxu0 0.0
    %103 = vmatpush1.msra.mxu0 0.0
    %104 = vmatprep.subr.mxu0 0.0
    %105 = vmatpush1.msra.mxu0 0.0
    %106 = vmatprep.subr.mxu0 0.0
    %107 = vmatpush1.msra.mxu0 0.0
    %108 = vmatprep.subr.mxu0 0.0
    %109 = vmatpush1.msra.mxu0 0.0
    %110 = vmatprep.subr.mxu0 0.0
    %111 = vmatpush1.msra.mxu0 0.0
    %112 = vmatprep.mubr.f32.mxu0 0.0
    %113 = vmatmul.mubr.f32.gmra.mrb[0].mxu0 %v43
    %v114 = vpop.f32.mrb[0].mxu0
    %v115 = vadd.f32 %v39, %v114
    %v116 = vpop.f32.mrb[0].mxu0
    %117 = vmatprep.mubr.f32.mxu0 0.0
    %118 = vmatmul.mubr.f32.gmra.mrb[0].mxu0 %v46
    %v119 = vpop.f32.mrb[0].mxu0
    %v120 = vadd.f32 %v39, %v119
    %v121 = vpop.f32.mrb[0].mxu0
    %122 = vdwg.mxu0
    %v123 = vld [vmem:[%s2] sm:$0xff]
    %v124 = vld [vmem:[%s2 + $0x8] sm:$0xff]
    %v125 = vld [vmem:[%s2 + $0x10] sm:$0xff]
    %v126 = vld [vmem:[%s2 + $0x18] sm:$0xff]
    %v127 = vld [vmem:[%s4] sm:$0xff]
    %v128 = vld [vmem:[%s4 + $0x8] sm:$0xff]
    %v129 = vld [vmem:[%s4 + $0x10] sm:$0xff]
    %v130 = vld [vmem:[%s4 + $0x18] sm:$0xff]
    %v131 = vld [vmem:[%s4 + $0x20] sm:$0xff]
    %v132 = vld [vmem:[%s4 + $0x28] sm:$0xff]
    %v133 = vld [vmem:[%s4 + $0x30] sm:$0xff]
    %v134 = vld [vmem:[%s4 + $0x38] sm:$0xff]
    %v135 = vld [vmem:[%s5] sm:$0x1]
    %vm136 = vcmask 261120
    %v138 = vsel %vm136, 0.0, 0
    %140 = vmatprep.subr.mxu0 0.0
    %141 = vmatpush1.msra.mxu0 %v123
    %142 = vmatprep.subr.mxu0 0.0
    %143 = vmatpush1.msra.mxu0 %v124
    %144 = vmatprep.subr.mxu0 0.0
    %145 = vmatpush1.msra.mxu0 %v125
    %146 = vmatprep.subr.mxu0 0.0
    %147 = vmatpush1.msra.mxu0 %v126
    %148 = vmatprep.subr.mxu0 0.0
    %149 = vmatpush1.msra.mxu0 0.0
    %150 = vmatprep.subr.mxu0 0.0
    %151 = vmatpush1.msra.mxu0 0.0
    %152 = vmatprep.subr.mxu0 0.0
    %153 = vmatpush1.msra.mxu0 0.0
    %154 = vmatprep.subr.mxu0 0.0
    %155 = vmatpush1.msra.mxu0 0.0
    %156 = vmatprep.subr.mxu0 0.0
    %157 = vmatpush1.msra.mxu0 0.0
    %158 = vmatprep.subr.mxu0 0.0
    %159 = vmatpush1.msra.mxu0 0.0
    %160 = vmatprep.subr.mxu0 0.0
    %161 = vmatpush1.msra.mxu0 0.0
    %162 = vmatprep.subr.mxu0 0.0
    %163 = vmatpush1.msra.mxu0 0.0
    %164 = vmatprep.subr.mxu0 0.0
    %165 = vmatpush1.msra.mxu0 0.0
    %166 = vmatprep.subr.mxu0 0.0
    %167 = vmatpush1.msra.mxu0 0.0
    %168 = vmatprep.subr.mxu0 0.0
    %169 = vmatpush1.msra.mxu0 0.0
    %170 = vmatprep.subr.mxu0 0.0
    %171 = vmatpush1.msra.mxu0 0.0
    %172 = vmatprep.subr.mxu0 0.0
    %173 = vmatpush1.msra.mxu0 0.0
    %174 = vmatprep.subr.mxu0 0.0
    %175 = vmatpush1.msra.mxu0 0.0
    %176 = vmatprep.subr.mxu0 0.0
    %177 = vmatpush1.msra.mxu0 0.0
    %178 = vmatprep.subr.mxu0 0.0
    %179 = vmatpush1.msra.mxu0 0.0
    %180 = vmatprep.subr.mxu0 0.0
    %181 = vmatpush1.msra.mxu0 0.0
    %182 = vmatprep.subr.mxu0 0.0
    %183 = vmatpush1.msra.mxu0 0.0
    %184 = vmatprep.subr.mxu0 0.0
    %185 = vmatpush1.msra.mxu0 0.0
    %186 = vmatprep.subr.mxu0 0.0
    %187 = vmatpush1.msra.mxu0 0.0
    %188 = vmatprep.subr.mxu0 0.0
    %189 = vmatpush1.msra.mxu0 0.0
    %190 = vmatprep.subr.mxu0 0.0
    %191 = vmatpush1.msra.mxu0 0.0
    %192 = vmatprep.subr.mxu0 0.0
    %193 = vmatpush1.msra.mxu0 0.0
    %194 = vmatprep.subr.mxu0 0.0
    %195 = vmatpush1.msra.mxu0 0.0
    %196 = vmatprep.subr.mxu0 0.0
    %197 = vmatpush1.msra.mxu0 0.0
    %198 = vmatprep.subr.mxu0 0.0
    %199 = vmatpush1.msra.mxu0 0.0
    %200 = vmatprep.subr.mxu0 0.0
    %201 = vmatpush1.msra.mxu0 0.0
    %202 = vmatprep.subr.mxu0 0.0
    %203 = vmatpush1.msra.mxu0 0.0
    %204 = vmatprep.mubr.f32.mxu0 0.0
    %205 = vmatmul.mubr.f32.gmra.mrb[0].mxu0 %v138
    %v206 = vpop.f32.mrb[0].mxu0
    %v207 = vadd.f32 0.0, %v206
    %v208 = vpop.f32.mrb[0].mxu0
    %209 = vdwg.mxu0
    %v210 = vadd.f32 %v115, %v207
    %v211 = vtanh.pop %v210
    %v212 = vsel %vm136, %v211, 0.0
    %v214 = vlaneseq
    %v215 = vshrl.u32 %v214, 7
    %v216 = vsub.s32 0, %v215
    %v217 = vrot.slane %v135, %v216
    %vm219 = vcmask 523264
    %v221 = vsel %vm219, %v212, 0
    %223 = vmatprep.subr.mxu0 0.0
    %224 = vmatpush1.msra.mxu0 %v127
    %225 = vmatprep.subr.mxu0 0.0
    %226 = vmatpush1.msra.mxu0 %v128
    %227 = vmatprep.subr.mxu0 0.0
    %228 = vmatpush1.msra.mxu0 %v129
    %229 = vmatprep.subr.mxu0 0.0
    %230 = vmatpush1.msra.mxu0 %v130
    %231 = vmatprep.subr.mxu0 0.0
    %232 = vmatpush1.msra.mxu0 %v131
    %233 = vmatprep.subr.mxu0 0.0
    %234 = vmatpush1.msra.mxu0 %v132
    %235 = vmatprep.subr.mxu0 0.0
    %236 = vmatpush1.msra.mxu0 %v133
    %237 = vmatprep.subr.mxu0 0.0
    %238 = vmatpush1.msra.mxu0 %v134
    %239 = vmatprep.subr.mxu0 0.0
    %240 = vmatpush1.msra.mxu0 0.0
    %241 = vmatprep.subr.mxu0 0.0
    %242 = vmatpush1.msra.mxu0 0.0
    %243 = vmatprep.subr.mxu0 0.0
    %244 = vmatpush1.msra.mxu0 0.0
    %245 = vmatprep.subr.mxu0 0.0
    %246 = vmatpush1.msra.mxu0 0.0
    %247 = vmatprep.subr.mxu0 0.0
    %248 = vmatpush1.msra.mxu0 0.0
    %249 = vmatprep.subr.mxu0 0.0
    %250 = vmatpush1.msra.mxu0 0.0
    %251 = vmatprep.subr.mxu0 0.0
    %252 = vmatpush1.msra.mxu0 0.0
    %253 = vmatprep.subr.mxu0 0.0
    %254 = vmatpush1.msra.mxu0 0.0
    %255 = vmatprep.subr.mxu0 0.0
    %256 = vmatpush1.msra.mxu0 0.0
    %257 = vmatprep.subr.mxu0 0.0
    %258 = vmatpush1.msra.mxu0 0.0
    %259 = vmatprep.subr.mxu0 0.0
    %260 = vmatpush1.msra.mxu0 0.0
    %261 = vmatprep.subr.mxu0 0.0
    %262 = vmatpush1.msra.mxu0 0.0
    %263 = vmatprep.subr.mxu0 0.0
    %264 = vmatpush1.msra.mxu0 0.0
    %265 = vmatprep.subr.mxu0 0.0
    %266 = vmatpush1.msra.mxu0 0.0
    %267 = vmatprep.subr.mxu0 0.0
    %268 = vmatpush1.msra.mxu0 0.0
    %269 = vmatprep.subr.mxu0 0.0
    %270 = vmatpush1.msra.mxu0 0.0
    %271 = vmatprep.subr.mxu0 0.0
    %272 = vmatpush1.msra.mxu0 0.0
    %273 = vmatprep.subr.mxu0 0.0
    %274 = vmatpush1.msra.mxu0 0.0
    %275 = vmatprep.subr.mxu0 0.0
    %276 = vmatpush1.msra.mxu0 0.0
    %277 = vmatprep.subr.mxu0 0.0
    %278 = vmatpush1.msra.mxu0 0.0
    %279 = vmatprep.subr.mxu0 0.0
    %280 = vmatpush1.msra.mxu0 0.0
    %281 = vmatprep.subr.mxu0 0.0
    %282 = vmatpush1.msra.mxu0 0.0
    %283 = vmatprep.subr.mxu0 0.0
    %284 = vmatpush1.msra.mxu0 0.0
    %285 = vmatprep.subr.mxu0 0.0
    %286 = vmatpush1.msra.mxu0 0.0
    %287 = vmatprep.mubr.f32.mxu0 0.0
    %288 = vmatmul.mubr.f32.gmra.mrb[0].mxu0 %v221
    %v289 = vpop.f32.mrb[0].mxu0
    %v290 = vadd.f32 %v217, %v289
    %v291 = vpop.f32.mrb[0].mxu0
    %292 = vdwg.mxu0
    %v293 = vtanh.pop %v290
    %v295 = vsel %vm136, %v211, 0
    %297 = vmatprep.subr.mxu0 0.0
    %298 = vmatpush1.msra.mxu0 %v123
    %299 = vmatprep.subr.mxu0 0.0
    %300 = vmatpush1.msra.mxu0 %v124
    %301 = vmatprep.subr.mxu0 0.0
    %302 = vmatpush1.msra.mxu0 %v125
    %303 = vmatprep.subr.mxu0 0.0
    %304 = vmatpush1.msra.mxu0 %v126
    %305 = vmatprep.subr.mxu0 0.0
    %306 = vmatpush1.msra.mxu0 0.0
    %307 = vmatprep.subr.mxu0 0.0
    %308 = vmatpush1.msra.mxu0 0.0
    %309 = vmatprep.subr.mxu0 0.0
    %310 = vmatpush1.msra.mxu0 0.0
    %311 = vmatprep.subr.mxu0 0.0
    %312 = vmatpush1.msra.mxu0 0.0
    %313 = vmatprep.subr.mxu0 0.0
    %314 = vmatpush1.msra.mxu0 0.0
    %315 = vmatprep.subr.mxu0 0.0
    %316 = vmatpush1.msra.mxu0 0.0
    %317 = vmatprep.subr.mxu0 0.0
    %318 = vmatpush1.msra.mxu0 0.0
    %319 = vmatprep.subr.mxu0 0.0
    %320 = vmatpush1.msra.mxu0 0.0
    %321 = vmatprep.subr.mxu0 0.0
    %322 = vmatpush1.msra.mxu0 0.0
    %323 = vmatprep.subr.mxu0 0.0
    %324 = vmatpush1.msra.mxu0 0.0
    %325 = vmatprep.subr.mxu0 0.0
    %326 = vmatpush1.msra.mxu0 0.0
    %327 = vmatprep.subr.mxu0 0.0
    %328 = vmatpush1.msra.mxu0 0.0
    %329 = vmatprep.subr.mxu0 0.0
    %330 = vmatpush1.msra.mxu0 0.0
    %331 = vmatprep.subr.mxu0 0.0
    %332 = vmatpush1.msra.mxu0 0.0
    %333 = vmatprep.subr.mxu0 0.0
    %334 = vmatpush1.msra.mxu0 0.0
    %335 = vmatprep.subr.mxu0 0.0
    %336 = vmatpush1.msra.mxu0 0.0
    %337 = vmatprep.subr.mxu0 0.0
    %338 = vmatpush1.msra.mxu0 0.0
    %339 = vmatprep.subr.mxu0 0.0
    %340 = vmatpush1.msra.mxu0 0.0
    %341 = vmatprep.subr.mxu0 0.0
    %342 = vmatpush1.msra.mxu0 0.0
    %343 = vmatprep.subr.mxu0 0.0
    %344 = vmatpush1.msra.mxu0 0.0
    %345 = vmatprep.subr.mxu0 0.0
    %346 = vmatpush1.msra.mxu0 0.0
    %347 = vmatprep.subr.mxu0 0.0
    %348 = vmatpush1.msra.mxu0 0.0
    %349 = vmatprep.subr.mxu0 0.0
    %350 = vmatpush1.msra.mxu0 0.0
    %351 = vmatprep.subr.mxu0 0.0
    %352 = vmatpush1.msra.mxu0 0.0
    %353 = vmatprep.subr.mxu0 0.0
    %354 = vmatpush1.msra.mxu0 0.0
    %355 = vmatprep.subr.mxu0 0.0
    %356 = vmatpush1.msra.mxu0 0.0
    %357 = vmatprep.subr.mxu0 0.0
    %358 = vmatpush1.msra.mxu0 0.0
    %359 = vmatprep.subr.mxu0 0.0
    %360 = vmatpush1.msra.mxu0 0.0
    %361 = vmatprep.mubr.f32.mxu0 0.0
    %362 = vmatmul.mubr.f32.gmra.mrb[0].mxu0 %v295
    %v363 = vpop.f32.mrb[0].mxu0
    %v364 = vadd.f32 0.0, %v363
    %v365 = vpop.f32.mrb[0].mxu0
    %366 = vdwg.mxu0
    %v368 = vrot.slane %v364, 6
    %v370 = vadd.f32 %v115, %v368
    %v371 = vtanh.pop %v370
    %v373 = vrot.slane %v293, 6
    %374 = vrot.lane.b32.xlu0 %v373, 32
    %v375 = vpop.permute.xlu0 %374
    %v377 = vsel %vm136, %v371, %v375
    %v379 = vrot.slane %v377, 2
    %v380 = vsel %vm219, %v379, 0
    %382 = vmatprep.subr.mxu0 0.0
    %383 = vmatpush1.msra.mxu0 %v127
    %384 = vmatprep.subr.mxu0 0.0
    %385 = vmatpush1.msra.mxu0 %v128
    %386 = vmatprep.subr.mxu0 0.0
    %387 = vmatpush1.msra.mxu0 %v129
    %388 = vmatprep.subr.mxu0 0.0
    %389 = vmatpush1.msra.mxu0 %v130
    %390 = vmatprep.subr.mxu0 0.0
    %391 = vmatpush1.msra.mxu0 %v131
    %392 = vmatprep.subr.mxu0 0.0
    %393 = vmatpush1.msra.mxu0 %v132
    %394 = vmatprep.subr.mxu0 0.0
    %395 = vmatpush1.msra.mxu0 %v133
    %396 = vmatprep.subr.mxu0 0.0
    %397 = vmatpush1.msra.mxu0 %v134
    %398 = vmatprep.subr.mxu0 0.0
    %399 = vmatpush1.msra.mxu0 0.0
    %400 = vmatprep.subr.mxu0 0.0
    %401 = vmatpush1.msra.mxu0 0.0
    %402 = vmatprep.subr.mxu0 0.0
    %403 = vmatpush1.msra.mxu0 0.0
    %404 = vmatprep.subr.mxu0 0.0
    %405 = vmatpush1.msra.mxu0 0.0
    %406 = vmatprep.subr.mxu0 0.0
    %407 = vmatpush1.msra.mxu0 0.0
    %408 = vmatprep.subr.mxu0 0.0
    %409 = vmatpush1.msra.mxu0 0.0
    %410 = vmatprep.subr.mxu0 0.0
    %411 = vmatpush1.msra.mxu0 0.0
    %412 = vmatprep.subr.mxu0 0.0
    %413 = vmatpush1.msra.mxu0 0.0
    %414 = vmatprep.subr.mxu0 0.0
    %415 = vmatpush1.msra.mxu0 0.0
    %416 = vmatprep.subr.mxu0 0.0
    %417 = vmatpush1.msra.mxu0 0.0
    %418 = vmatprep.subr.mxu0 0.0
    %419 = vmatpush1.msra.mxu0 0.0
    %420 = vmatprep.subr.mxu0 0.0
    %421 = vmatpush1.msra.mxu0 0.0
    %422 = vmatprep.subr.mxu0 0.0
    %423 = vmatpush1.msra.mxu0 0.0
    %424 = vmatprep.subr.mxu0 0.0
    %425 = vmatpush1.msra.mxu0 0.0
    %426 = vmatprep.subr.mxu0 0.0
    %427 = vmatpush1.msra.mxu0 0.0
    %428 = vmatprep.subr.mxu0 0.0
    %429 = vmatpush1.msra.mxu0 0.0
    %430 = vmatprep.subr.mxu0 0.0
    %431 = vmatpush1.msra.mxu0 0.0
    %432 = vmatprep.subr.mxu0 0.0
    %433 = vmatpush1.msra.mxu0 0.0
    %434 = vmatprep.subr.mxu0 0.0
    %435 = vmatpush1.msra.mxu0 0.0
    %436 = vmatprep.subr.mxu0 0.0
    %437 = vmatpush1.msra.mxu0 0.0
    %438 = vmatprep.subr.mxu0 0.0
    %439 = vmatpush1.msra.mxu0 0.0
    %440 = vmatprep.subr.mxu0 0.0
    %441 = vmatpush1.msra.mxu0 0.0
    %442 = vmatprep.subr.mxu0 0.0
    %443 = vmatpush1.msra.mxu0 0.0
    %444 = vmatprep.subr.mxu0 0.0
    %445 = vmatpush1.msra.mxu0 0.0
    %446 = vmatprep.mubr.f32.mxu0 0.0
    %447 = vmatmul.mubr.f32.gmra.mrb[0].mxu0 %v380
    %v448 = vpop.f32.mrb[0].mxu0
    %v449 = vadd.f32 %v217, %v448
    %v450 = vpop.f32.mrb[0].mxu0
    %451 = vdwg.mxu0
    %v452 = vtanh.pop %v449
    %v454 = vrot.slane %v371, 2
    %v455 = vsel %vm136, %v454, 0
    %457 = vmatprep.subr.mxu0 0.0
    %458 = vmatpush1.msra.mxu0 %v123
    %459 = vmatprep.subr.mxu0 0.0
    %460 = vmatpush1.msra.mxu0 %v124
    %461 = vmatprep.subr.mxu0 0.0
    %462 = vmatpush1.msra.mxu0 %v125
    %463 = vmatprep.subr.mxu0 0.0
    %464 = vmatpush1.msra.mxu0 %v126
    %465 = vmatprep.subr.mxu0 0.0
    %466 = vmatpush1.msra.mxu0 0.0
    %467 = vmatprep.subr.mxu0 0.0
    %468 = vmatpush1.msra.mxu0 0.0
    %469 = vmatprep.subr.mxu0 0.0
    %470 = vmatpush1.msra.mxu0 0.0
    %471 = vmatprep.subr.mxu0 0.0
    %472 = vmatpush1.msra.mxu0 0.0
    %473 = vmatprep.subr.mxu0 0.0
    %474 = vmatpush1.msra.mxu0 0.0
    %475 = vmatprep.subr.mxu0 0.0
    %476 = vmatpush1.msra.mxu0 0.0
    %477 = vmatprep.subr.mxu0 0.0
    %478 = vmatpush1.msra.mxu0 0.0
    %479 = vmatprep.subr.mxu0 0.0
    %480 = vmatpush1.msra.mxu0 0.0
    %481 = vmatprep.subr.mxu0 0.0
    %482 = vmatpush1.msra.mxu0 0.0
    %483 = vmatprep.subr.mxu0 0.0
    %484 = vmatpush1.msra.mxu0 0.0
    %485 = vmatprep.subr.mxu0 0.0
    %486 = vmatpush1.msra.mxu0 0.0
    %487 = vmatprep.subr.mxu0 0.0
    %488 = vmatpush1.msra.mxu0 0.0
    %489 = vmatprep.subr.mxu0 0.0
    %490 = vmatpush1.msra.mxu0 0.0
    %491 = vmatprep.subr.mxu0 0.0
    %492 = vmatpush1.msra.mxu0 0.0
    %493 = vmatprep.subr.mxu0 0.0
    %494 = vmatpush1.msra.mxu0 0.0
    %495 = vmatprep.subr.mxu0 0.0
    %496 = vmatpush1.msra.mxu0 0.0
    %497 = vmatprep.subr.mxu0 0.0
    %498 = vmatpush1.msra.mxu0 0.0
    %499 = vmatprep.subr.mxu0 0.0
    %500 = vmatpush1.msra.mxu0 0.0
    %501 = vmatprep.subr.mxu0 0.0
    %502 = vmatpush1.msra.mxu0 0.0
    %503 = vmatprep.subr.mxu0 0.0
    %504 = vmatpush1.msra.mxu0 0.0
    %505 = vmatprep.subr.mxu0 0.0
    %506 = vmatpush1.msra.mxu0 0.0
    %507 = vmatprep.subr.mxu0 0.0
    %508 = vmatpush1.msra.mxu0 0.0
    %509 = vmatprep.subr.mxu0 0.0
    %510 = vmatpush1.msra.mxu0 0.0
    %511 = vmatprep.subr.mxu0 0.0
    %512 = vmatpush1.msra.mxu0 0.0
    %513 = vmatprep.subr.mxu0 0.0
    %514 = vmatpush1.msra.mxu0 0.0
    %515 = vmatprep.subr.mxu0 0.0
    %516 = vmatpush1.msra.mxu0 0.0
    %517 = vmatprep.subr.mxu0 0.0
    %518 = vmatpush1.msra.mxu0 0.0
    %519 = vmatprep.subr.mxu0 0.0
    %520 = vmatpush1.msra.mxu0 0.0
    %521 = vmatprep.mubr.f32.mxu0 0.0
    %522 = vmatmul.mubr.f32.gmra.mrb[0].mxu0 %v455
    %v523 = vpop.f32.mrb[0].mxu0
    %v524 = vadd.f32 0.0, %v523
    %v525 = vpop.f32.mrb[0].mxu0
    %526 = vdwg.mxu0
    %v528 = vrot.slane %v524, 4
    %v530 = vadd.f32 %v115, %v528
    %v531 = vtanh.pop %v530
    %v533 = vrot.slane %v452, 4
    %534 = vrot.lane.b32.xlu0 %v533, 32
    %v535 = vpop.permute.xlu0 %534
    %v537 = vsel %vm136, %v531, %v535
    %v539 = vrot.slane %v537, 4
    %v540 = vsel %vm219, %v539, 0
    %542 = vmatprep.subr.mxu0 0.0
    %543 = vmatpush1.msra.mxu0 %v127
    %544 = vmatprep.subr.mxu0 0.0
    %545 = vmatpush1.msra.mxu0 %v128
    %546 = vmatprep.subr.mxu0 0.0
    %547 = vmatpush1.msra.mxu0 %v129
    %548 = vmatprep.subr.mxu0 0.0
    %549 = vmatpush1.msra.mxu0 %v130
    %550 = vmatprep.subr.mxu0 0.0
    %551 = vmatpush1.msra.mxu0 %v131
    %552 = vmatprep.subr.mxu0 0.0
    %553 = vmatpush1.msra.mxu0 %v132
    %554 = vmatprep.subr.mxu0 0.0
    %555 = vmatpush1.msra.mxu0 %v133
    %556 = vmatprep.subr.mxu0 0.0
    %557 = vmatpush1.msra.mxu0 %v134
    %558 = vmatprep.subr.mxu0 0.0
    %559 = vmatpush1.msra.mxu0 0.0
    %560 = vmatprep.subr.mxu0 0.0
    %561 = vmatpush1.msra.mxu0 0.0
    %562 = vmatprep.subr.mxu0 0.0
    %563 = vmatpush1.msra.mxu0 0.0
    %564 = vmatprep.subr.mxu0 0.0
    %565 = vmatpush1.msra.mxu0 0.0
    %566 = vmatprep.subr.mxu0 0.0
    %567 = vmatpush1.msra.mxu0 0.0
    %568 = vmatprep.subr.mxu0 0.0
    %569 = vmatpush1.msra.mxu0 0.0
    %570 = vmatprep.subr.mxu0 0.0
    %571 = vmatpush1.msra.mxu0 0.0
    %572 = vmatprep.subr.mxu0 0.0
    %573 = vmatpush1.msra.mxu0 0.0
    %574 = vmatprep.subr.mxu0 0.0
    %575 = vmatpush1.msra.mxu0 0.0
    %576 = vmatprep.subr.mxu0 0.0
    %577 = vmatpush1.msra.mxu0 0.0
    %578 = vmatprep.subr.mxu0 0.0
    %579 = vmatpush1.msra.mxu0 0.0
    %580 = vmatprep.subr.mxu0 0.0
    %581 = vmatpush1.msra.mxu0 0.0
    %582 = vmatprep.subr.mxu0 0.0
    %583 = vmatpush1.msra.mxu0 0.0
    %584 = vmatprep.subr.mxu0 0.0
    %585 = vmatpush1.msra.mxu0 0.0
    %586 = vmatprep.subr.mxu0 0.0
    %587 = vmatpush1.msra.mxu0 0.0
    %588 = vmatprep.subr.mxu0 0.0
    %589 = vmatpush1.msra.mxu0 0.0
    %590 = vmatprep.subr.mxu0 0.0
    %591 = vmatpush1.msra.mxu0 0.0
    %592 = vmatprep.subr.mxu0 0.0
    %593 = vmatpush1.msra.mxu0 0.0
    %594 = vmatprep.subr.mxu0 0.0
    %595 = vmatpush1.msra.mxu0 0.0
    %596 = vmatprep.subr.mxu0 0.0
    %597 = vmatpush1.msra.mxu0 0.0
    %598 = vmatprep.subr.mxu0 0.0
    %599 = vmatpush1.msra.mxu0 0.0
    %600 = vmatprep.subr.mxu0 0.0
    %601 = vmatpush1.msra.mxu0 0.0
    %602 = vmatprep.subr.mxu0 0.0
    %603 = vmatpush1.msra.mxu0 0.0
    %604 = vmatprep.subr.mxu0 0.0
    %605 = vmatpush1.msra.mxu0 0.0
    %606 = vmatprep.mubr.f32.mxu0 0.0
    %607 = vmatmul.mubr.f32.gmra.mrb[0].mxu0 %v540
    %v608 = vpop.f32.mrb[0].mxu0
    %v609 = vadd.f32 %v217, %v608
    %v610 = vpop.f32.mrb[0].mxu0
    %611 = vdwg.mxu0
    %v612 = vtanh.pop %v609
    %v614 = vrot.slane %v531, 4
    %v615 = vsel %vm136, %v614, 0
    %617 = vmatprep.subr.mxu0 0.0
    %618 = vmatpush1.msra.mxu0 %v123
    %619 = vmatprep.subr.mxu0 0.0
    %620 = vmatpush1.msra.mxu0 %v124
    %621 = vmatprep.subr.mxu0 0.0
    %622 = vmatpush1.msra.mxu0 %v125
    %623 = vmatprep.subr.mxu0 0.0
    %624 = vmatpush1.msra.mxu0 %v126
    %625 = vmatprep.subr.mxu0 0.0
    %626 = vmatpush1.msra.mxu0 0.0
    %627 = vmatprep.subr.mxu0 0.0
    %628 = vmatpush1.msra.mxu0 0.0
    %629 = vmatprep.subr.mxu0 0.0
    %630 = vmatpush1.msra.mxu0 0.0
    %631 = vmatprep.subr.mxu0 0.0
    %632 = vmatpush1.msra.mxu0 0.0
    %633 = vmatprep.subr.mxu0 0.0
    %634 = vmatpush1.msra.mxu0 0.0
    %635 = vmatprep.subr.mxu0 0.0
    %636 = vmatpush1.msra.mxu0 0.0
    %637 = vmatprep.subr.mxu0 0.0
    %638 = vmatpush1.msra.mxu0 0.0
    %639 = vmatprep.subr.mxu0 0.0
    %640 = vmatpush1.msra.mxu0 0.0
    %641 = vmatprep.subr.mxu0 0.0
    %642 = vmatpush1.msra.mxu0 0.0
    %643 = vmatprep.subr.mxu0 0.0
    %644 = vmatpush1.msra.mxu0 0.0
    %645 = vmatprep.subr.mxu0 0.0
    %646 = vmatpush1.msra.mxu0 0.0
    %647 = vmatprep.subr.mxu0 0.0
    %648 = vmatpush1.msra.mxu0 0.0
    %649 = vmatprep.subr.mxu0 0.0
    %650 = vmatpush1.msra.mxu0 0.0
    %651 = vmatprep.subr.mxu0 0.0
    %652 = vmatpush1.msra.mxu0 0.0
    %653 = vmatprep.subr.mxu0 0.0
    %654 = vmatpush1.msra.mxu0 0.0
    %655 = vmatprep.subr.mxu0 0.0
    %656 = vmatpush1.msra.mxu0 0.0
    %657 = vmatprep.subr.mxu0 0.0
    %658 = vmatpush1.msra.mxu0 0.0
    %659 = vmatprep.subr.mxu0 0.0
    %660 = vmatpush1.msra.mxu0 0.0
    %661 = vmatprep.subr.mxu0 0.0
    %662 = vmatpush1.msra.mxu0 0.0
    %663 = vmatprep.subr.mxu0 0.0
    %664 = vmatpush1.msra.mxu0 0.0
    %665 = vmatprep.subr.mxu0 0.0
    %666 = vmatpush1.msra.mxu0 0.0
    %667 = vmatprep.subr.mxu0 0.0
    %668 = vmatpush1.msra.mxu0 0.0
    %669 = vmatprep.subr.mxu0 0.0
    %670 = vmatpush1.msra.mxu0 0.0
    %671 = vmatprep.subr.mxu0 0.0
    %672 = vmatpush1.msra.mxu0 0.0
    %673 = vmatprep.subr.mxu0 0.0
    %674 = vmatpush1.msra.mxu0 0.0
    %675 = vmatprep.subr.mxu0 0.0
    %676 = vmatpush1.msra.mxu0 0.0
    %677 = vmatprep.subr.mxu0 0.0
    %678 = vmatpush1.msra.mxu0 0.0
    %679 = vmatprep.subr.mxu0 0.0
    %680 = vmatpush1.msra.mxu0 0.0
    %681 = vmatprep.mubr.f32.mxu0 0.0
    %682 = vmatmul.mubr.f32.gmra.mrb[0].mxu0 %v615
    %v683 = vpop.f32.mrb[0].mxu0
    %v684 = vadd.f32 0.0, %v683
    %v685 = vpop.f32.mrb[0].mxu0
    %686 = vdwg.mxu0
    %v688 = vrot.slane %v684, 2
    %v690 = vadd.f32 %v115, %v688
    %v691 = vtanh.pop %v690
    %v693 = vrot.slane %v612, 2
    %694 = vrot.lane.b32.xlu0 %v693, 32
    %v695 = vpop.permute.xlu0 %694
    %v697 = vsel %vm136, %v691, %v695
    %v699 = vrot.slane %v697, 6
    %v700 = vsel %vm219, %v699, 0
    %702 = vmatprep.subr.mxu0 0.0
    %703 = vmatpush1.msra.mxu0 %v127
    %704 = vmatprep.subr.mxu0 0.0
    %705 = vmatpush1.msra.mxu0 %v128
    %706 = vmatprep.subr.mxu0 0.0
    %707 = vmatpush1.msra.mxu0 %v129
    %708 = vmatprep.subr.mxu0 0.0
    %709 = vmatpush1.msra.mxu0 %v130
    %710 = vmatprep.subr.mxu0 0.0
    %711 = vmatpush1.msra.mxu0 %v131
    %712 = vmatprep.subr.mxu0 0.0
    %713 = vmatpush1.msra.mxu0 %v132
    %714 = vmatprep.subr.mxu0 0.0
    %715 = vmatpush1.msra.mxu0 %v133
    %716 = vmatprep.subr.mxu0 0.0
    %717 = vmatpush1.msra.mxu0 %v134
    %718 = vmatprep.subr.mxu0 0.0
    %719 = vmatpush1.msra.mxu0 0.0
    %720 = vmatprep.subr.mxu0 0.0
    %721 = vmatpush1.msra.mxu0 0.0
    %722 = vmatprep.subr.mxu0 0.0
    %723 = vmatpush1.msra.mxu0 0.0
    %724 = vmatprep.subr.mxu0 0.0
    %725 = vmatpush1.msra.mxu0 0.0
    %726 = vmatprep.subr.mxu0 0.0
    %727 = vmatpush1.msra.mxu0 0.0
    %728 = vmatprep.subr.mxu0 0.0
    %729 = vmatpush1.msra.mxu0 0.0
    %730 = vmatprep.subr.mxu0 0.0
    %731 = vmatpush1.msra.mxu0 0.0
    %732 = vmatprep.subr.mxu0 0.0
    %733 = vmatpush1.msra.mxu0 0.0
    %734 = vmatprep.subr.mxu0 0.0
    %735 = vmatpush1.msra.mxu0 0.0
    %736 = vmatprep.subr.mxu0 0.0
    %737 = vmatpush1.msra.mxu0 0.0
    %738 = vmatprep.subr.mxu0 0.0
    %739 = vmatpush1.msra.mxu0 0.0
    %740 = vmatprep.subr.mxu0 0.0
    %741 = vmatpush1.msra.mxu0 0.0
    %742 = vmatprep.subr.mxu0 0.0
    %743 = vmatpush1.msra.mxu0 0.0
    %744 = vmatprep.subr.mxu0 0.0
    %745 = vmatpush1.msra.mxu0 0.0
    %746 = vmatprep.subr.mxu0 0.0
    %747 = vmatpush1.msra.mxu0 0.0
    %748 = vmatprep.subr.mxu0 0.0
    %749 = vmatpush1.msra.mxu0 0.0
    %750 = vmatprep.subr.mxu0 0.0
    %751 = vmatpush1.msra.mxu0 0.0
    %752 = vmatprep.subr.mxu0 0.0
    %753 = vmatpush1.msra.mxu0 0.0
    %754 = vmatprep.subr.mxu0 0.0
    %755 = vmatpush1.msra.mxu0 0.0
    %756 = vmatprep.subr.mxu0 0.0
    %757 = vmatpush1.msra.mxu0 0.0
    %758 = vmatprep.subr.mxu0 0.0
    %759 = vmatpush1.msra.mxu0 0.0
    %760 = vmatprep.subr.mxu0 0.0
    %761 = vmatpush1.msra.mxu0 0.0
    %762 = vmatprep.subr.mxu0 0.0
    %763 = vmatpush1.msra.mxu0 0.0
    %764 = vmatprep.subr.mxu0 0.0
    %765 = vmatpush1.msra.mxu0 0.0
    %766 = vmatprep.mubr.f32.mxu0 0.0
    %767 = vmatmul.mubr.f32.gmra.mrb[0].mxu0 %v700
    %v768 = vpop.f32.mrb[0].mxu0
    %v769 = vadd.f32 %v217, %v768
    %v770 = vpop.f32.mrb[0].mxu0
    %771 = vdwg.mxu0
    %v772 = vtanh.pop %v769
    %v774 = vrot.slane %v691, 6
    %v775 = vsel %vm136, %v774, 0
    %777 = vmatprep.subr.mxu0 0.0
    %778 = vmatpush1.msra.mxu0 %v123
    %779 = vmatprep.subr.mxu0 0.0
    %780 = vmatpush1.msra.mxu0 %v124
    %781 = vmatprep.subr.mxu0 0.0
    %782 = vmatpush1.msra.mxu0 %v125
    %783 = vmatprep.subr.mxu0 0.0
    %784 = vmatpush1.msra.mxu0 %v126
    %785 = vmatprep.subr.mxu0 0.0
    %786 = vmatpush1.msra.mxu0 0.0
    %787 = vmatprep.subr.mxu0 0.0
    %788 = vmatpush1.msra.mxu0 0.0
    %789 = vmatprep.subr.mxu0 0.0
    %790 = vmatpush1.msra.mxu0 0.0
    %791 = vmatprep.subr.mxu0 0.0
    %792 = vmatpush1.msra.mxu0 0.0
    %793 = vmatprep.subr.mxu0 0.0
    %794 = vmatpush1.msra.mxu0 0.0
    %795 = vmatprep.subr.mxu0 0.0
    %796 = vmatpush1.msra.mxu0 0.0
    %797 = vmatprep.subr.mxu0 0.0
    %798 = vmatpush1.msra.mxu0 0.0
    %799 = vmatprep.subr.mxu0 0.0
    %800 = vmatpush1.msra.mxu0 0.0
    %801 = vmatprep.subr.mxu0 0.0
    %802 = vmatpush1.msra.mxu0 0.0
    %803 = vmatprep.subr.mxu0 0.0
    %804 = vmatpush1.msra.mxu0 0.0
    %805 = vmatprep.subr.mxu0 0.0
    %806 = vmatpush1.msra.mxu0 0.0
    %807 = vmatprep.subr.mxu0 0.0
    %808 = vmatpush1.msra.mxu0 0.0
    %809 = vmatprep.subr.mxu0 0.0
    %810 = vmatpush1.msra.mxu0 0.0
    %811 = vmatprep.subr.mxu0 0.0
    %812 = vmatpush1.msra.mxu0 0.0
    %813 = vmatprep.subr.mxu0 0.0
    %814 = vmatpush1.msra.mxu0 0.0
    %815 = vmatprep.subr.mxu0 0.0
    %816 = vmatpush1.msra.mxu0 0.0
    %817 = vmatprep.subr.mxu0 0.0
    %818 = vmatpush1.msra.mxu0 0.0
    %819 = vmatprep.subr.mxu0 0.0
    %820 = vmatpush1.msra.mxu0 0.0
    %821 = vmatprep.subr.mxu0 0.0
    %822 = vmatpush1.msra.mxu0 0.0
    %823 = vmatprep.subr.mxu0 0.0
    %824 = vmatpush1.msra.mxu0 0.0
    %825 = vmatprep.subr.mxu0 0.0
    %826 = vmatpush1.msra.mxu0 0.0
    %827 = vmatprep.subr.mxu0 0.0
    %828 = vmatpush1.msra.mxu0 0.0
    %829 = vmatprep.subr.mxu0 0.0
    %830 = vmatpush1.msra.mxu0 0.0
    %831 = vmatprep.subr.mxu0 0.0
    %832 = vmatpush1.msra.mxu0 0.0
    %833 = vmatprep.subr.mxu0 0.0
    %834 = vmatpush1.msra.mxu0 0.0
    %835 = vmatprep.subr.mxu0 0.0
    %836 = vmatpush1.msra.mxu0 0.0
    %837 = vmatprep.subr.mxu0 0.0
    %838 = vmatpush1.msra.mxu0 0.0
    %839 = vmatprep.subr.mxu0 0.0
    %840 = vmatpush1.msra.mxu0 0.0
    %841 = vmatprep.mubr.f32.mxu0 0.0
    %842 = vmatmul.mubr.f32.gmra.mrb[0].mxu0 %v775
    %v843 = vpop.f32.mrb[0].mxu0
    %v844 = vadd.f32 0.0, %v843
    %v845 = vpop.f32.mrb[0].mxu0
    %846 = vdwg.mxu0
    %v847 = vadd.f32 %v120, %v844
    %v848 = vtanh.pop %v847
    %850 = vrot.lane.b32.xlu0 %v772, 32
    %v851 = vpop.permute.xlu0 %850
    %v853 = vsel %vm136, %v848, %v851
    %v855 = vsel %vm219, %v853, 0
    %857 = vmatprep.subr.mxu0 0.0
    %858 = vmatpush1.msra.mxu0 %v127
    %859 = vmatprep.subr.mxu0 0.0
    %860 = vmatpush1.msra.mxu0 %v128
    %861 = vmatprep.subr.mxu0 0.0
    %862 = vmatpush1.msra.mxu0 %v129
    %863 = vmatprep.subr.mxu0 0.0
    %864 = vmatpush1.msra.mxu0 %v130
    %865 = vmatprep.subr.mxu0 0.0
    %866 = vmatpush1.msra.mxu0 %v131
    %867 = vmatprep.subr.mxu0 0.0
    %868 = vmatpush1.msra.mxu0 %v132
    %869 = vmatprep.subr.mxu0 0.0
    %870 = vmatpush1.msra.mxu0 %v133
    %871 = vmatprep.subr.mxu0 0.0
    %872 = vmatpush1.msra.mxu0 %v134
    %873 = vmatprep.subr.mxu0 0.0
    %874 = vmatpush1.msra.mxu0 0.0
    %875 = vmatprep.subr.mxu0 0.0
    %876 = vmatpush1.msra.mxu0 0.0
    %877 = vmatprep.subr.mxu0 0.0
    %878 = vmatpush1.msra.mxu0 0.0
    %879 = vmatprep.subr.mxu0 0.0
    %880 = vmatpush1.msra.mxu0 0.0
    %881 = vmatprep.subr.mxu0 0.0
    %882 = vmatpush1.msra.mxu0 0.0
    %883 = vmatprep.subr.mxu0 0.0
    %884 = vmatpush1.msra.mxu0 0.0
    %885 = vmatprep.subr.mxu0 0.0
    %886 = vmatpush1.msra.mxu0 0.0
    %887 = vmatprep.subr.mxu0 0.0
    %888 = vmatpush1.msra.mxu0 0.0
    %889 = vmatprep.subr.mxu0 0.0
    %890 = vmatpush1.msra.mxu0 0.0
    %891 = vmatprep.subr.mxu0 0.0
    %892 = vmatpush1.msra.mxu0 0.0
    %893 = vmatprep.subr.mxu0 0.0
    %894 = vmatpush1.msra.mxu0 0.0
    %895 = vmatprep.subr.mxu0 0.0
    %896 = vmatpush1.msra.mxu0 0.0
    %897 = vmatprep.subr.mxu0 0.0
    %898 = vmatpush1.msra.mxu0 0.0
    %899 = vmatprep.subr.mxu0 0.0
    %900 = vmatpush1.msra.mxu0 0.0
    %901 = vmatprep.subr.mxu0 0.0
    %902 = vmatpush1.msra.mxu0 0.0
    %903 = vmatprep.subr.mxu0 0.0
    %904 = vmatpush1.msra.mxu0 0.0
    %905 = vmatprep.subr.mxu0 0.0
    %906 = vmatpush1.msra.mxu0 0.0
    %907 = vmatprep.subr.mxu0 0.0
    %908 = vmatpush1.msra.mxu0 0.0
    %909 = vmatprep.subr.mxu0 0.0
    %910 = vmatpush1.msra.mxu0 0.0
    %911 = vmatprep.subr.mxu0 0.0
    %912 = vmatpush1.msra.mxu0 0.0
    %913 = vmatprep.subr.mxu0 0.0
    %914 = vmatpush1.msra.mxu0 0.0
    %915 = vmatprep.subr.mxu0 0.0
    %916 = vmatpush1.msra.mxu0 0.0
    %917 = vmatprep.subr.mxu0 0.0
    %918 = vmatpush1.msra.mxu0 0.0
    %919 = vmatprep.subr.mxu0 0.0
    %920 = vmatpush1.msra.mxu0 0.0
    %921 = vmatprep.mubr.f32.mxu0 0.0
    %922 = vmatmul.mubr.f32.gmra.mrb[0].mxu0 %v855
    %v923 = vpop.f32.mrb[0].mxu0
    %v924 = vadd.f32 %v217, %v923
    %v925 = vpop.f32.mrb[0].mxu0
    %926 = vdwg.mxu0
    %v927 = vtanh.pop %v924
    %v929 = vsel %vm136, %v848, 0
    %931 = vmatprep.subr.mxu0 0.0
    %932 = vmatpush1.msra.mxu0 %v123
    %933 = vmatprep.subr.mxu0 0.0
    %934 = vmatpush1.msra.mxu0 %v124
    %935 = vmatprep.subr.mxu0 0.0
    %936 = vmatpush1.msra.mxu0 %v125
    %937 = vmatprep.subr.mxu0 0.0
    %938 = vmatpush1.msra.mxu0 %v126
    %939 = vmatprep.subr.mxu0 0.0
    %940 = vmatpush1.msra.mxu0 0.0
    %941 = vmatprep.subr.mxu0 0.0
    %942 = vmatpush1.msra.mxu0 0.0
    %943 = vmatprep.subr.mxu0 0.0
    %944 = vmatpush1.msra.mxu0 0.0
    %945 = vmatprep.subr.mxu0 0.0
    %946 = vmatpush1.msra.mxu0 0.0
    %947 = vmatprep.subr.mxu0 0.0
    %948 = vmatpush1.msra.mxu0 0.0
    %949 = vmatprep.subr.mxu0 0.0
    %950 = vmatpush1.msra.mxu0 0.0
    %951 = vmatprep.subr.mxu0 0.0
    %952 = vmatpush1.msra.mxu0 0.0
    %953 = vmatprep.subr.mxu0 0.0
    %954 = vmatpush1.msra.mxu0 0.0
    %955 = vmatprep.subr.mxu0 0.0
    %956 = vmatpush1.msra.mxu0 0.0
    %957 = vmatprep.subr.mxu0 0.0
    %958 = vmatpush1.msra.mxu0 0.0
    %959 = vmatprep.subr.mxu0 0.0
    %960 = vmatpush1.msra.mxu0 0.0
    %961 = vmatprep.subr.mxu0 0.0
    %962 = vmatpush1.msra.mxu0 0.0
    %963 = vmatprep.subr.mxu0 0.0
    %964 = vmatpush1.msra.mxu0 0.0
    %965 = vmatprep.subr.mxu0 0.0
    %966 = vmatpush1.msra.mxu0 0.0
    %967 = vmatprep.subr.mxu0 0.0
    %968 = vmatpush1.msra.mxu0 0.0
    %969 = vmatprep.subr.mxu0 0.0
    %970 = vmatpush1.msra.mxu0 0.0
    %971 = vmatprep.subr.mxu0 0.0
    %972 = vmatpush1.msra.mxu0 0.0
    %973 = vmatprep.subr.mxu0 0.0
    %974 = vmatpush1.msra.mxu0 0.0
    %975 = vmatprep.subr.mxu0 0.0
    %976 = vmatpush1.msra.mxu0 0.0
    %977 = vmatprep.subr.mxu0 0.0
    %978 = vmatpush1.msra.mxu0 0.0
    %979 = vmatprep.subr.mxu0 0.0
    %980 = vmatpush1.msra.mxu0 0.0
    %981 = vmatprep.subr.mxu0 0.0
    %982 = vmatpush1.msra.mxu0 0.0
    %983 = vmatprep.subr.mxu0 0.0
    %984 = vmatpush1.msra.mxu0 0.0
    %985 = vmatprep.subr.mxu0 0.0
    %986 = vmatpush1.msra.mxu0 0.0
    %987 = vmatprep.subr.mxu0 0.0
    %988 = vmatpush1.msra.mxu0 0.0
    %989 = vmatprep.subr.mxu0 0.0
    %990 = vmatpush1.msra.mxu0 0.0
    %991 = vmatprep.subr.mxu0 0.0
    %992 = vmatpush1.msra.mxu0 0.0
    %993 = vmatprep.subr.mxu0 0.0
    %994 = vmatpush1.msra.mxu0 0.0
    %995 = vmatprep.mubr.f32.mxu0 0.0
    %996 = vmatmul.mubr.f32.gmra.mrb[0].mxu0 %v929
    %v997 = vpop.f32.mrb[0].mxu0
    %v998 = vadd.f32 0.0, %v997
    %v999 = vpop.f32.mrb[0].mxu0
    %1000 = vdwg.mxu0
    %v1002 = vrot.slane %v998, 6
    %v1004 = vadd.f32 %v120, %v1002
    %v1005 = vtanh.pop %v1004
    %v1007 = vrot.slane %v927, 6
    %1008 = vrot.lane.b32.xlu0 %v1007, 32
    %v1009 = vpop.permute.xlu0 %1008
    %v1011 = vsel %vm136, %v1005, %v1009
    %v1013 = vrot.slane %v1011, 2
    %v1014 = vsel %vm219, %v1013, 0
    %1016 = vmatprep.subr.mxu0 0.0
    %1017 = vmatpush1.msra.mxu0 %v127
    %1018 = vmatprep.subr.mxu0 0.0
    %1019 = vmatpush1.msra.mxu0 %v128
    %1020 = vmatprep.subr.mxu0 0.0
    %1021 = vmatpush1.msra.mxu0 %v129
    %1022 = vmatprep.subr.mxu0 0.0
    %1023 = vmatpush1.msra.mxu0 %v130
    %1024 = vmatprep.subr.mxu0 0.0
    %1025 = vmatpush1.msra.mxu0 %v131
    %1026 = vmatprep.subr.mxu0 0.0
    %1027 = vmatpush1.msra.mxu0 %v132
    %1028 = vmatprep.subr.mxu0 0.0
    %1029 = vmatpush1.msra.mxu0 %v133
    %1030 = vmatprep.subr.mxu0 0.0
    %1031 = vmatpush1.msra.mxu0 %v134
    %1032 = vmatprep.subr.mxu0 0.0
    %1033 = vmatpush1.msra.mxu0 0.0
    %1034 = vmatprep.subr.mxu0 0.0
    %1035 = vmatpush1.msra.mxu0 0.0
    %1036 = vmatprep.subr.mxu0 0.0
    %1037 = vmatpush1.msra.mxu0 0.0
    %1038 = vmatprep.subr.mxu0 0.0
    %1039 = vmatpush1.msra.mxu0 0.0
    %1040 = vmatprep.subr.mxu0 0.0
    %1041 = vmatpush1.msra.mxu0 0.0
    %1042 = vmatprep.subr.mxu0 0.0
    %1043 = vmatpush1.msra.mxu0 0.0
    %1044 = vmatprep.subr.mxu0 0.0
    %1045 = vmatpush1.msra.mxu0 0.0
    %1046 = vmatprep.subr.mxu0 0.0
    %1047 = vmatpush1.msra.mxu0 0.0
    %1048 = vmatprep.subr.mxu0 0.0
    %1049 = vmatpush1.msra.mxu0 0.0
    %1050 = vmatprep.subr.mxu0 0.0
    %1051 = vmatpush1.msra.mxu0 0.0
    %1052 = vmatprep.subr.mxu0 0.0
    %1053 = vmatpush1.msra.mxu0 0.0
    %1054 = vmatprep.subr.mxu0 0.0
    %1055 = vmatpush1.msra.mxu0 0.0
    %1056 = vmatprep.subr.mxu0 0.0
    %1057 = vmatpush1.msra.mxu0 0.0
    %1058 = vmatprep.subr.mxu0 0.0
    %1059 = vmatpush1.msra.mxu0 0.0
    %1060 = vmatprep.subr.mxu0 0.0
    %1061 = vmatpush1.msra.mxu0 0.0
    %1062 = vmatprep.subr.mxu0 0.0
    %1063 = vmatpush1.msra.mxu0 0.0
    %1064 = vmatprep.subr.mxu0 0.0
    %1065 = vmatpush1.msra.mxu0 0.0
    %1066 = vmatprep.subr.mxu0 0.0
    %1067 = vmatpush1.msra.mxu0 0.0
    %1068 = vmatprep.subr.mxu0 0.0
    %1069 = vmatpush1.msra.mxu0 0.0
    %1070 = vmatprep.subr.mxu0 0.0
    %1071 = vmatpush1.msra.mxu0 0.0
    %1072 = vmatprep.subr.mxu0 0.0
    %1073 = vmatpush1.msra.mxu0 0.0
    %1074 = vmatprep.subr.mxu0 0.0
    %1075 = vmatpush1.msra.mxu0 0.0
    %1076 = vmatprep.subr.mxu0 0.0
    %1077 = vmatpush1.msra.mxu0 0.0
    %1078 = vmatprep.subr.mxu0 0.0
    %1079 = vmatpush1.msra.mxu0 0.0
    %1080 = vmatprep.mubr.f32.mxu0 0.0
    %1081 = vmatmul.mubr.f32.gmra.mrb[0].mxu0 %v1014
    %v1082 = vpop.f32.mrb[0].mxu0
    %v1083 = vadd.f32 %v217, %v1082
    %v1084 = vpop.f32.mrb[0].mxu0
    %1085 = vdwg.mxu0
    %v1086 = vtanh.pop %v1083
    %v1088 = vrot.slane %v1005, 2
    %v1089 = vsel %vm136, %v1088, 0
    %1091 = vmatprep.subr.mxu0 0.0
    %1092 = vmatpush1.msra.mxu0 %v123
    %1093 = vmatprep.subr.mxu0 0.0
    %1094 = vmatpush1.msra.mxu0 %v124
    %1095 = vmatprep.subr.mxu0 0.0
    %1096 = vmatpush1.msra.mxu0 %v125
    %1097 = vmatprep.subr.mxu0 0.0
    %1098 = vmatpush1.msra.mxu0 %v126
    %1099 = vmatprep.subr.mxu0 0.0
    %1100 = vmatpush1.msra.mxu0 0.0
    %1101 = vmatprep.subr.mxu0 0.0
    %1102 = vmatpush1.msra.mxu0 0.0
    %1103 = vmatprep.subr.mxu0 0.0
    %1104 = vmatpush1.msra.mxu0 0.0
    %1105 = vmatprep.subr.mxu0 0.0
    %1106 = vmatpush1.msra.mxu0 0.0
    %1107 = vmatprep.subr.mxu0 0.0
    %1108 = vmatpush1.msra.mxu0 0.0
    %1109 = vmatprep.subr.mxu0 0.0
    %1110 = vmatpush1.msra.mxu0 0.0
    %1111 = vmatprep.subr.mxu0 0.0
    %1112 = vmatpush1.msra.mxu0 0.0
    %1113 = vmatprep.subr.mxu0 0.0
    %1114 = vmatpush1.msra.mxu0 0.0
    %1115 = vmatprep.subr.mxu0 0.0
    %1116 = vmatpush1.msra.mxu0 0.0
    %1117 = vmatprep.subr.mxu0 0.0
    %1118 = vmatpush1.msra.mxu0 0.0
    %1119 = vmatprep.subr.mxu0 0.0
    %1120 = vmatpush1.msra.mxu0 0.0
    %1121 = vmatprep.subr.mxu0 0.0
    %1122 = vmatpush1.msra.mxu0 0.0
    %1123 = vmatprep.subr.mxu0 0.0
    %1124 = vmatpush1.msra.mxu0 0.0
    %1125 = vmatprep.subr.mxu0 0.0
    %1126 = vmatpush1.msra.mxu0 0.0
    %1127 = vmatprep.subr.mxu0 0.0
    %1128 = vmatpush1.msra.mxu0 0.0
    %1129 = vmatprep.subr.mxu0 0.0
    %1130 = vmatpush1.msra.mxu0 0.0
    %1131 = vmatprep.subr.mxu0 0.0
    %1132 = vmatpush1.msra.mxu0 0.0
    %1133 = vmatprep.subr.mxu0 0.0
    %1134 = vmatpush1.msra.mxu0 0.0
    %1135 = vmatprep.subr.mxu0 0.0
    %1136 = vmatpush1.msra.mxu0 0.0
    %1137 = vmatprep.subr.mxu0 0.0
    %1138 = vmatpush1.msra.mxu0 0.0
    %1139 = vmatprep.subr.mxu0 0.0
    %1140 = vmatpush1.msra.mxu0 0.0
    %1141 = vmatprep.subr.mxu0 0.0
    %1142 = vmatpush1.msra.mxu0 0.0
    %1143 = vmatprep.subr.mxu0 0.0
    %1144 = vmatpush1.msra.mxu0 0.0
    %1145 = vmatprep.subr.mxu0 0.0
    %1146 = vmatpush1.msra.mxu0 0.0
    %1147 = vmatprep.subr.mxu0 0.0
    %1148 = vmatpush1.msra.mxu0 0.0
    %1149 = vmatprep.subr.mxu0 0.0
    %1150 = vmatpush1.msra.mxu0 0.0
    %1151 = vmatprep.subr.mxu0 0.0
    %1152 = vmatpush1.msra.mxu0 0.0
    %1153 = vmatprep.subr.mxu0 0.0
    %1154 = vmatpush1.msra.mxu0 0.0
    %1155 = vmatprep.mubr.f32.mxu0 0.0
    %1156 = vmatmul.mubr.f32.gmra.mrb[0].mxu0 %v1089
    %v1157 = vpop.f32.mrb[0].mxu0
    %v1158 = vadd.f32 0.0, %v1157
    %v1159 = vpop.f32.mrb[0].mxu0
    %1160 = vdwg.mxu0
    %v1162 = vrot.slane %v1158, 4
    %v1164 = vadd.f32 %v120, %v1162
    %v1165 = vtanh.pop %v1164
    %v1167 = vrot.slane %v1086, 4
    %1168 = vrot.lane.b32.xlu0 %v1167, 32
    %v1169 = vpop.permute.xlu0 %1168
    %v1171 = vsel %vm136, %v1165, %v1169
    %v1173 = vrot.slane %v1171, 4
    %v1174 = vsel %vm219, %v1173, 0
    %1176 = vmatprep.subr.mxu0 0.0
    %1177 = vmatpush1.msra.mxu0 %v127
    %1178 = vmatprep.subr.mxu0 0.0
    %1179 = vmatpush1.msra.mxu0 %v128
    %1180 = vmatprep.subr.mxu0 0.0
    %1181 = vmatpush1.msra.mxu0 %v129
    %1182 = vmatprep.subr.mxu0 0.0
    %1183 = vmatpush1.msra.mxu0 %v130
    %1184 = vmatprep.subr.mxu0 0.0
    %1185 = vmatpush1.msra.mxu0 %v131
    %1186 = vmatprep.subr.mxu0 0.0
    %1187 = vmatpush1.msra.mxu0 %v132
    %1188 = vmatprep.subr.mxu0 0.0
    %1189 = vmatpush1.msra.mxu0 %v133
    %1190 = vmatprep.subr.mxu0 0.0
    %1191 = vmatpush1.msra.mxu0 %v134
    %1192 = vmatprep.subr.mxu0 0.0
    %1193 = vmatpush1.msra.mxu0 0.0
    %1194 = vmatprep.subr.mxu0 0.0
    %1195 = vmatpush1.msra.mxu0 0.0
    %1196 = vmatprep.subr.mxu0 0.0
    %1197 = vmatpush1.msra.mxu0 0.0
    %1198 = vmatprep.subr.mxu0 0.0
    %1199 = vmatpush1.msra.mxu0 0.0
    %1200 = vmatprep.subr.mxu0 0.0
    %1201 = vmatpush1.msra.mxu0 0.0
    %1202 = vmatprep.subr.mxu0 0.0
    %1203 = vmatpush1.msra.mxu0 0.0
    %1204 = vmatprep.subr.mxu0 0.0
    %1205 = vmatpush1.msra.mxu0 0.0
    %1206 = vmatprep.subr.mxu0 0.0
    %1207 = vmatpush1.msra.mxu0 0.0
    %1208 = vmatprep.subr.mxu0 0.0
    %1209 = vmatpush1.msra.mxu0 0.0
    %1210 = vmatprep.subr.mxu0 0.0
    %1211 = vmatpush1.msra.mxu0 0.0
    %1212 = vmatprep.subr.mxu0 0.0
    %1213 = vmatpush1.msra.mxu0 0.0
    %1214 = vmatprep.subr.mxu0 0.0
    %1215 = vmatpush1.msra.mxu0 0.0
    %1216 = vmatprep.subr.mxu0 0.0
    %1217 = vmatpush1.msra.mxu0 0.0
    %1218 = vmatprep.subr.mxu0 0.0
    %1219 = vmatpush1.msra.mxu0 0.0
    %1220 = vmatprep.subr.mxu0 0.0
    %1221 = vmatpush1.msra.mxu0 0.0
    %1222 = vmatprep.subr.mxu0 0.0
    %1223 = vmatpush1.msra.mxu0 0.0
    %1224 = vmatprep.subr.mxu0 0.0
    %1225 = vmatpush1.msra.mxu0 0.0
    %1226 = vmatprep.subr.mxu0 0.0
    %1227 = vmatpush1.msra.mxu0 0.0
    %1228 = vmatprep.subr.mxu0 0.0
    %1229 = vmatpush1.msra.mxu0 0.0
    %1230 = vmatprep.subr.mxu0 0.0
    %1231 = vmatpush1.msra.mxu0 0.0
    %1232 = vmatprep.subr.mxu0 0.0
    %1233 = vmatpush1.msra.mxu0 0.0
    %1234 = vmatprep.subr.mxu0 0.0
    %1235 = vmatpush1.msra.mxu0 0.0
    %1236 = vmatprep.subr.mxu0 0.0
    %1237 = vmatpush1.msra.mxu0 0.0
    %1238 = vmatprep.subr.mxu0 0.0
    %1239 = vmatpush1.msra.mxu0 0.0
    %1240 = vmatprep.mubr.f32.mxu0 0.0
    %1241 = vmatmul.mubr.f32.gmra.mrb[0].mxu0 %v1174
    %v1242 = vpop.f32.mrb[0].mxu0
    %v1243 = vadd.f32 %v217, %v1242
    %v1244 = vpop.f32.mrb[0].mxu0
    %1245 = vdwg.mxu0
    %v1246 = vtanh.pop %v1243
    %v1248 = vrot.slane %v1165, 4
    %v1249 = vsel %vm136, %v1248, 0
    %1251 = vmatprep.subr.mxu0 0.0
    %1252 = vmatpush1.msra.mxu0 %v123
    %1253 = vmatprep.subr.mxu0 0.0
    %1254 = vmatpush1.msra.mxu0 %v124
    %1255 = vmatprep.subr.mxu0 0.0
    %1256 = vmatpush1.msra.mxu0 %v125
    %1257 = vmatprep.subr.mxu0 0.0
    %1258 = vmatpush1.msra.mxu0 %v126
    %1259 = vmatprep.subr.mxu0 0.0
    %1260 = vmatpush1.msra.mxu0 0.0
    %1261 = vmatprep.subr.mxu0 0.0
    %1262 = vmatpush1.msra.mxu0 0.0
    %1263 = vmatprep.subr.mxu0 0.0
    %1264 = vmatpush1.msra.mxu0 0.0
    %1265 = vmatprep.subr.mxu0 0.0
    %1266 = vmatpush1.msra.mxu0 0.0
    %1267 = vmatprep.subr.mxu0 0.0
    %1268 = vmatpush1.msra.mxu0 0.0
    %1269 = vmatprep.subr.mxu0 0.0
    %1270 = vmatpush1.msra.mxu0 0.0
    %1271 = vmatprep.subr.mxu0 0.0
    %1272 = vmatpush1.msra.mxu0 0.0
    %1273 = vmatprep.subr.mxu0 0.0
    %1274 = vmatpush1.msra.mxu0 0.0
    %1275 = vmatprep.subr.mxu0 0.0
    %1276 = vmatpush1.msra.mxu0 0.0
    %1277 = vmatprep.subr.mxu0 0.0
    %1278 = vmatpush1.msra.mxu0 0.0
    %1279 = vmatprep.subr.mxu0 0.0
    %1280 = vmatpush1.msra.mxu0 0.0
    %1281 = vmatprep.subr.mxu0 0.0
    %1282 = vmatpush1.msra.mxu0 0.0
    %1283 = vmatprep.subr.mxu0 0.0
    %1284 = vmatpush1.msra.mxu0 0.0
    %1285 = vmatprep.subr.mxu0 0.0
    %1286 = vmatpush1.msra.mxu0 0.0
    %1287 = vmatprep.subr.mxu0 0.0
    %1288 = vmatpush1.msra.mxu0 0.0
    %1289 = vmatprep.subr.mxu0 0.0
    %1290 = vmatpush1.msra.mxu0 0.0
    %1291 = vmatprep.subr.mxu0 0.0
    %1292 = vmatpush1.msra.mxu0 0.0
    %1293 = vmatprep.subr.mxu0 0.0
    %1294 = vmatpush1.msra.mxu0 0.0
    %1295 = vmatprep.subr.mxu0 0.0
    %1296 = vmatpush1.msra.mxu0 0.0
    %1297 = vmatprep.subr.mxu0 0.0
    %1298 = vmatpush1.msra.mxu0 0.0
    %1299 = vmatprep.subr.mxu0 0.0
    %1300 = vmatpush1.msra.mxu0 0.0
    %1301 = vmatprep.subr.mxu0 0.0
    %1302 = vmatpush1.msra.mxu0 0.0
    %1303 = vmatprep.subr.mxu0 0.0
    %1304 = vmatpush1.msra.mxu0 0.0
    %1305 = vmatprep.subr.mxu0 0.0
    %1306 = vmatpush1.msra.mxu0 0.0
    %1307 = vmatprep.subr.mxu0 0.0
    %1308 = vmatpush1.msra.mxu0 0.0
    %1309 = vmatprep.subr.mxu0 0.0
    %1310 = vmatpush1.msra.mxu0 0.0
    %1311 = vmatprep.subr.mxu0 0.0
    %1312 = vmatpush1.msra.mxu0 0.0
    %1313 = vmatprep.subr.mxu0 0.0
    %1314 = vmatpush1.msra.mxu0 0.0
    %1315 = vmatprep.mubr.f32.mxu0 0.0
    %1316 = vmatmul.mubr.f32.gmra.mrb[0].mxu0 %v1249
    %v1317 = vpop.f32.mrb[0].mxu0
    %v1318 = vadd.f32 0.0, %v1317
    %v1319 = vpop.f32.mrb[0].mxu0
    %1320 = vdwg.mxu0
    %v1322 = vrot.slane %v1318, 2
    %v1324 = vadd.f32 %v120, %v1322
    %v1325 = vtanh.pop %v1324
    %v1327 = vrot.slane %v1246, 2
    %1328 = vrot.lane.b32.xlu0 %v1327, 32
    %v1329 = vpop.permute.xlu0 %1328
    %v1331 = vsel %vm136, %v1325, %v1329
    %v1333 = vrot.slane %v1331, 6
    %v1334 = vsel %vm219, %v1333, 0
    %1336 = vmatprep.subr.mxu0 0.0
    %1337 = vmatpush1.msra.mxu0 %v127
    %1338 = vmatprep.subr.mxu0 0.0
    %1339 = vmatpush1.msra.mxu0 %v128
    %1340 = vmatprep.subr.mxu0 0.0
    %1341 = vmatpush1.msra.mxu0 %v129
    %1342 = vmatprep.subr.mxu0 0.0
    %1343 = vmatpush1.msra.mxu0 %v130
    %1344 = vmatprep.subr.mxu0 0.0
    %1345 = vmatpush1.msra.mxu0 %v131
    %1346 = vmatprep.subr.mxu0 0.0
    %1347 = vmatpush1.msra.mxu0 %v132
    %1348 = vmatprep.subr.mxu0 0.0
    %1349 = vmatpush1.msra.mxu0 %v133
    %1350 = vmatprep.subr.mxu0 0.0
    %1351 = vmatpush1.msra.mxu0 %v134
    %1352 = vmatprep.subr.mxu0 0.0
    %1353 = vmatpush1.msra.mxu0 0.0
    %1354 = vmatprep.subr.mxu0 0.0
    %1355 = vmatpush1.msra.mxu0 0.0
    %1356 = vmatprep.subr.mxu0 0.0
    %1357 = vmatpush1.msra.mxu0 0.0
    %1358 = vmatprep.subr.mxu0 0.0
    %1359 = vmatpush1.msra.mxu0 0.0
    %1360 = vmatprep.subr.mxu0 0.0
    %1361 = vmatpush1.msra.mxu0 0.0
    %1362 = vmatprep.subr.mxu0 0.0
    %1363 = vmatpush1.msra.mxu0 0.0
    %1364 = vmatprep.subr.mxu0 0.0
    %1365 = vmatpush1.msra.mxu0 0.0
    %1366 = vmatprep.subr.mxu0 0.0
    %1367 = vmatpush1.msra.mxu0 0.0
    %1368 = vmatprep.subr.mxu0 0.0
    %1369 = vmatpush1.msra.mxu0 0.0
    %1370 = vmatprep.subr.mxu0 0.0
    %1371 = vmatpush1.msra.mxu0 0.0
    %1372 = vmatprep.subr.mxu0 0.0
    %1373 = vmatpush1.msra.mxu0 0.0
    %1374 = vmatprep.subr.mxu0 0.0
    %1375 = vmatpush1.msra.mxu0 0.0
    %1376 = vmatprep.subr.mxu0 0.0
    %1377 = vmatpush1.msra.mxu0 0.0
    %1378 = vmatprep.subr.mxu0 0.0
    %1379 = vmatpush1.msra.mxu0 0.0
    %1380 = vmatprep.subr.mxu0 0.0
    %1381 = vmatpush1.msra.mxu0 0.0
    %1382 = vmatprep.subr.mxu0 0.0
    %1383 = vmatpush1.msra.mxu0 0.0
    %1384 = vmatprep.subr.mxu0 0.0
    %1385 = vmatpush1.msra.mxu0 0.0
    %1386 = vmatprep.subr.mxu0 0.0
    %1387 = vmatpush1.msra.mxu0 0.0
    %1388 = vmatprep.subr.mxu0 0.0
    %1389 = vmatpush1.msra.mxu0 0.0
    %1390 = vmatprep.subr.mxu0 0.0
    %1391 = vmatpush1.msra.mxu0 0.0
    %1392 = vmatprep.subr.mxu0 0.0
    %1393 = vmatpush1.msra.mxu0 0.0
    %1394 = vmatprep.subr.mxu0 0.0
    %1395 = vmatpush1.msra.mxu0 0.0
    %1396 = vmatprep.subr.mxu0 0.0
    %1397 = vmatpush1.msra.mxu0 0.0
    %1398 = vmatprep.subr.mxu0 0.0
    %1399 = vmatpush1.msra.mxu0 0.0
    %1400 = vmatprep.mubr.f32.mxu0 0.0
    %1401 = vmatmul.mubr.f32.gmra.mrb[0].mxu0 %v1334
    %v1402 = vpop.f32.mrb[0].mxu0
    %v1403 = vadd.f32 %v217, %v1402
    %v1404 = vpop.f32.mrb[0].mxu0
    %1405 = vdwg.mxu0
    %v1406 = vtanh.pop %v1403
    %1407 = vrot.lane.b32.xlu0 %v452, 32
    %v1408 = vpop.permute.xlu0 %1407
    %1410 = vrot.lane.b32.xlu0 %v612, 64
    %v1411 = vpop.permute.xlu0 %1410
    %1413 = vrot.lane.b32.xlu0 %v772, 96
    %v1414 = vpop.permute.xlu0 %1413
    %1416 = vrot.lane.b32.xlu0 %v1086, 32
    %v1417 = vpop.permute.xlu0 %1416
    %1419 = vrot.lane.b32.xlu0 %v1246, 64
    %v1420 = vpop.permute.xlu0 %1419
    %1423 = vrot.lane.b32.xlu0 %v1406, 96
    %v1424 = vpop.permute.xlu0 %1423
    %v1426 = vsel %vm136, %v293, %v1408
    %v1427 = vsel %vm219, %v1426, %v1411
    %vm1428 = vcmask 785408
    %v1429 = vsel %vm1428, %v1427, %v1414
    %v1430 = vsel %vm136, %v927, %v1417
    %v1431 = vsel %vm219, %v1430, %v1420
    %v1432 = vsel %vm1428, %v1431, %v1424
    %v1433 = vld [vmem:[%s6] sm:$0xff]
    %v1434 = vld [vmem:[%s6 + $0x8] sm:$0xff]
    %v1435 = vld [vmem:[%s6 + $0x10] sm:$0xff]
    %v1436 = vld [vmem:[%s6 + $0x18] sm:$0xff]
    %v1437 = vld [vmem:[%s6 + $0x20] sm:$0xff]
    %v1438 = vld [vmem:[%s6 + $0x28] sm:$0xff]
    %v1439 = vld [vmem:[%s6 + $0x30] sm:$0xff]
    %v1440 = vld [vmem:[%s6 + $0x38] sm:$0xff]
    %v1441 = vld [vmem:[%s6 + $0x40] sm:$0xff]
    %v1442 = vld [vmem:[%s6 + $0x48] sm:$0xff]
    %v1443 = vld [vmem:[%s6 + $0x50] sm:$0xff]
    %v1444 = vld [vmem:[%s6 + $0x58] sm:$0xff]
    %v1445 = vld [vmem:[%s6 + $0x60] sm:$0xff]
    %v1446 = vld [vmem:[%s6 + $0x68] sm:$0xff]
    %v1447 = vld [vmem:[%s6 + $0x70] sm:$0xff]
    %v1448 = vld [vmem:[%s6 + $0x78] sm:$0xff]
    %v1449 = vld [vmem:[%s6 + $0x80] sm:$0xff]
    %v1450 = vld [vmem:[%s6 + $0x88] sm:$0xff]
    %v1451 = vld [vmem:[%s6 + $0x90] sm:$0xff]
    %v1452 = vld [vmem:[%s6 + $0x98] sm:$0xff]
    %v1453 = vld [vmem:[%s6 + $0xa0] sm:$0xff]
    %v1454 = vld [vmem:[%s6 + $0xa8] sm:$0xff]
    %v1455 = vld [vmem:[%s6 + $0xb0] sm:$0xff]
    %v1456 = vld [vmem:[%s6 + $0xb8] sm:$0xff]
    %v1457 = vld [vmem:[%s6 + $0xc0] sm:$0xff]
    %v1458 = vld [vmem:[%s6 + $0xc8] sm:$0xff]
    %v1459 = vld [vmem:[%s6 + $0xd0] sm:$0xff]
    %v1460 = vld [vmem:[%s6 + $0xd8] sm:$0xff]
    %v1461 = vld [vmem:[%s6 + $0xe0] sm:$0xff]
    %v1462 = vld [vmem:[%s6 + $0xe8] sm:$0xff]
    %v1463 = vld [vmem:[%s6 + $0xf0] sm:$0xff]
    %v1464 = vld [vmem:[%s6 + $0xf8] sm:$0xff]
    %v1465 = vld [vmem:[%s7] sm:$0x1]
    %v1467 = vlaneseq
    %v1468 = vshrl.u32 %v1467, 7
    %v1469 = vsub.s32 0, %v1468
    %v1470 = vrot.slane %v1465, %v1469
    %1472 = vmatprep.subr.mxu0 0.0
    %1473 = vmatpush1.msra.mxu0 %v1433
    %1474 = vmatprep.subr.mxu0 0.0
    %1475 = vmatpush1.msra.mxu0 %v1434
    %1476 = vmatprep.subr.mxu0 0.0
    %1477 = vmatpush1.msra.mxu0 %v1435
    %1478 = vmatprep.subr.mxu0 0.0
    %1479 = vmatpush1.msra.mxu0 %v1436
    %1480 = vmatprep.subr.mxu0 0.0
    %1481 = vmatpush1.msra.mxu0 %v1437
    %1482 = vmatprep.subr.mxu0 0.0
    %1483 = vmatpush1.msra.mxu0 %v1438
    %1484 = vmatprep.subr.mxu0 0.0
    %1485 = vmatpush1.msra.mxu0 %v1439
    %1486 = vmatprep.subr.mxu0 0.0
    %1487 = vmatpush1.msra.mxu0 %v1440
    %1488 = vmatprep.subr.mxu0 0.0
    %1489 = vmatpush1.msra.mxu0 %v1441
    %1490 = vmatprep.subr.mxu0 0.0
    %1491 = vmatpush1.msra.mxu0 %v1442
    %1492 = vmatprep.subr.mxu0 0.0
    %1493 = vmatpush1.msra.mxu0 %v1443
    %1494 = vmatprep.subr.mxu0 0.0
    %1495 = vmatpush1.msra.mxu0 %v1444
    %1496 = vmatprep.subr.mxu0 0.0
    %1497 = vmatpush1.msra.mxu0 %v1445
    %1498 = vmatprep.subr.mxu0 0.0
    %1499 = vmatpush1.msra.mxu0 %v1446
    %1500 = vmatprep.subr.mxu0 0.0
    %1501 = vmatpush1.msra.mxu0 %v1447
    %1502 = vmatprep.subr.mxu0 0.0
    %1503 = vmatpush1.msra.mxu0 %v1448
    %1504 = vmatprep.subr.mxu0 0.0
    %1505 = vmatpush1.msra.mxu0 %v1449
    %1506 = vmatprep.subr.mxu0 0.0
    %1507 = vmatpush1.msra.mxu0 %v1450
    %1508 = vmatprep.subr.mxu0 0.0
    %1509 = vmatpush1.msra.mxu0 %v1451
    %1510 = vmatprep.subr.mxu0 0.0
    %1511 = vmatpush1.msra.mxu0 %v1452
    %1512 = vmatprep.subr.mxu0 0.0
    %1513 = vmatpush1.msra.mxu0 %v1453
    %1514 = vmatprep.subr.mxu0 0.0
    %1515 = vmatpush1.msra.mxu0 %v1454
    %1516 = vmatprep.subr.mxu0 0.0
    %1517 = vmatpush1.msra.mxu0 %v1455
    %1518 = vmatprep.subr.mxu0 0.0
    %1519 = vmatpush1.msra.mxu0 %v1456
    %1520 = vmatprep.subr.mxu0 0.0
    %1521 = vmatpush1.msra.mxu0 %v1457
    %1522 = vmatprep.subr.mxu0 0.0
    %1523 = vmatpush1.msra.mxu0 %v1458
    %1524 = vmatprep.subr.mxu0 0.0
    %1525 = vmatpush1.msra.mxu0 %v1459
    %1526 = vmatprep.subr.mxu0 0.0
    %1527 = vmatpush1.msra.mxu0 %v1460
    %1528 = vmatprep.subr.mxu0 0.0
    %1529 = vmatpush1.msra.mxu0 %v1461
    %1530 = vmatprep.subr.mxu0 0.0
    %1531 = vmatpush1.msra.mxu0 %v1462
    %1532 = vmatprep.subr.mxu0 0.0
    %1533 = vmatpush1.msra.mxu0 %v1463
    %1534 = vmatprep.subr.mxu0 0.0
    %1535 = vmatpush1.msra.mxu0 %v1464
    %1536 = vmatprep.mubr.f32.mxu0 %v1432
    %1537 = vmatmul.mubr.f32.gmra.mrb[0].mxu0 %v1429
    %v1538 = vpop.f32.mrb[0].mxu0
    %v1539 = vadd.f32 %v1470, %v1538
    %v1540 = vpop.f32.mrb[0].mxu0
    %1541 = vdwg.mxu0
    %vm1542 = vcmask 74752
    %1543 = vst.msk [vmem:[#allocation2] sm:$0x3] %vm1542, %v1539
    // Predicated region
    $region34: #{tpu_custom_call.1} parent=1 // pred_check
      _
    $region35: #{tpu_custom_call.1} parent=1 // pred_check_branch
      %1545 = sbr.rel (0) target = $region37
    $region36: #{tpu_custom_call.1} parent=1 // pred_region
      %s1547 = ssub.s32 32, 32
      %1548 = vsyncadd [#allocation3], %s1547
      %s1550 = sshll.u32 [#allocation2], 4
      %s1551 = int_to_ptr.vmem [resolvable:$true] %s1550
      %1553 = dma.vmem_to_hbm [thread:$0]  %s1551, 32, %s8, [#allocation3]
    $region37: #{tpu_custom_call.1} parent=1 // pred_fallthru
      _
    // Predicated region
    $region38: #{tpu_custom_call.1} parent=1 // pred_check
      _
    $region39: #{tpu_custom_call.1} parent=1 // pred_check_branch
      %1555 = sbr.rel (0) target = $region41
    $region40: #{tpu_custom_call.1} parent=1 // pred_region
      %1556 = dma.done [#allocation3], 32
    $region41: #{tpu_custom_call.1} parent=1 // pred_fallthru
      _
    %1557 = vsyncpa [#allocation3], 1

</llo_original>
